<compile_context>
chip_gen: v7x
topology: tpu7x:2x2x1
jax: 0.10.0
libtpu: 0.0.40
codegen_flags: <defaults>
</compile_context>

<pallas_src>
import functools

import jax
import jax.numpy as jnp
from jax.experimental import pallas as pl
from jax.experimental.pallas import tpu as pltpu


def _round_up(n, m):
    return ((n + m - 1) // m) * m


def _largest_divisor_leq(n, cap):
    d = max(1, min(cap, n))
    while n % d:
        d -= 1
    return d


# ---------------------------------------------------------------------------
# Kernel: one grid step == TB LSTM time steps through all 3 layers + head.
# Grid = (batch_shards [parallel], T // TB [arbitrary]).
# ---------------------------------------------------------------------------
def _valuenet_kernel(tok_ref, emb_ref,
                     w0x_ref, w0h_ref, b0_ref,
                     w1x_ref, w1h_ref, b1_ref,
                     w2x_ref, w2h_ref, b2_ref,
                     lw_ref, lb_ref,
                     h0_ref, c0_ref,
                     logits_ref, h_ref, c_ref,
                     *, TB, H):
    t_blk = pl.program_id(1)

    # h/c live in the (grid-resident, revisited) output buffers; seed them from the inputs at
    # the first time block of each batch shard.  Re-zero padded hidden lanes defensively so the
    # zero-pad invariant holds even if the caller hands in non-zero-padded state.
    @pl.when(t_blk == 0)
    def _init():
        Hp_ = h_ref.shape[-1]
        lane = jax.lax.broadcasted_iota(jnp.int32, (1, 1, Hp_), 2)
        mask = (lane < H).astype(jnp.float32)
        h_ref[...] = h0_ref[...] * mask
        c_ref[...] = c0_ref[...] * mask

    B = h_ref.shape[1]
    V = emb_ref.shape[0]
    Hp = h_ref.shape[-1]

    wx = (w0x_ref, w1x_ref, w2x_ref)
    wh = (w0h_ref, w1h_ref, w2h_ref)
    bs = (b0_ref, b1_ref, b2_ref)

    t_base = pl.multiple_of(t_blk * TB, TB)

    # Unrolled loop over the TB time steps of this block (static Python loop -> full unroll).
    for step in range(TB):
        # Tokens are resident; dynamic first-axis read of this step's (B, 1) ids.
        # NOTE: out-of-range / negative tokens silently produce a zero embedding
        # (nn.Embedding would raise).
        idx = tok_ref[t_base + step]                                          # (B, 1) int32
        onehot = (jax.lax.broadcasted_iota(jnp.int32, (B, V), 1) == idx).astype(jnp.bfloat16)
        x = jnp.dot(onehot, emb_ref[...], preferred_element_type=jnp.float32)  # (B, Ep) f32

        # 3-layer LSTM, one time step.  PyTorch gate order: i, f, g, o; gate k at cols k*Hp.
        for l in range(3):
            h_prev = h_ref[l]                                                 # (B, Hp) f32
            c_prev = c_ref[l]                                                 # (B, Hp) f32
            gates = (jnp.dot(x.astype(jnp.bfloat16), wx[l][...],
                             preferred_element_type=jnp.float32)
                     + jnp.dot(h_prev.astype(jnp.bfloat16), wh[l][...],
                               preferred_element_type=jnp.float32)
                     + bs[l][...])
            i_g = jax.nn.sigmoid(gates[:, 0 * Hp:1 * Hp])
            f_g = jax.nn.sigmoid(gates[:, 1 * Hp:2 * Hp])
            g_g = jnp.tanh(gates[:, 2 * Hp:3 * Hp])
            o_g = jax.nn.sigmoid(gates[:, 3 * Hp:4 * Hp])
            c_new = f_g * c_prev + i_g * g_g
            h_new = o_g * jnp.tanh(c_new)
            h_ref[l] = h_new
            c_ref[l] = c_new
            x = h_new

        # Output projection: hidden -> padded(voc_size * n_objs); lane-dense (Pp % 128 == 0).
        logits_ref[step] = (jnp.dot(x.astype(jnp.bfloat16), lw_ref[...],
                                    preferred_element_type=jnp.float32) + lb_ref[...])


# ---------------------------------------------------------------------------
# Parameter preparation (done once): pad to lane multiples, place gate cols, cast to bf16.
# ---------------------------------------------------------------------------
def prepare_params(params, n_objs):
    V, E = params["embed"].shape
    H = params["whh"][0].shape[0]
    Vn = params["lw"].shape[1]                    # V * n_objs
    Ep = _round_up(E, 128)
    Hp = _round_up(H, 128)
    Pp = _round_up(Vn, 128)

    def place_gate_cols(w, in_pad):               # (rows, 4H) -> (in_pad, 4Hp) bf16, gate k at k*Hp
        rows = w.shape[0]
        out = jnp.zeros((in_pad, 4 * Hp), jnp.float32)
        for k in range(4):
            out = out.at[:rows, k * Hp:k * Hp + H].set(w[:, k * H:(k + 1) * H])
        return out.astype(jnp.bfloat16)

    emb_p = jnp.zeros((V, Ep), jnp.float32).at[:, :E].set(params["embed"]).astype(jnp.bfloat16)

    wx, wh, bb = [], [], []
    for l in range(3):
        in_pad = Ep if l == 0 else Hp
        wx.append(place_gate_cols(params["wih"][l], in_pad))   # (in_pad, 4Hp) bf16
        wh.append(place_gate_cols(params["whh"][l], Hp))       # (Hp, 4Hp) bf16
        b = jnp.zeros((1, 4 * Hp), jnp.float32)
        for k in range(4):
            b = b.at[:, k * Hp:k * Hp + H].set(params["b"][l][:, k * H:(k + 1) * H])
        bb.append(b)

    lw_p = jnp.zeros((Hp, Pp), jnp.float32).at[:H, :Vn].set(params["lw"]).astype(jnp.bfloat16)
    lb_p = jnp.zeros((1, Pp), jnp.float32).at[:, :Vn].set(params["lb"])

    return {
        "embed": emb_p, "wx": wx, "wh": wh, "b": bb, "lw": lw_p, "lb": lb_p,
        "dims": dict(V=V, E=E, H=H, Ep=Ep, Hp=Hp, Vn=Vn, Pp=Pp, n_objs=n_objs),
    }


def _resident_spec(arr):
    """Constant-index, single-buffered BlockSpec: DMA'd once, stays resident in VMEM."""
    zeros = (0,) * arr.ndim
    return pl.BlockSpec(arr.shape, lambda b, t, _z=zeros: _z,
                        pipeline_mode=pl.Buffered(1))


# ---------------------------------------------------------------------------
# Wrapper: T-step teacher-forced rollout in one pallas_call (weights DMA'd once).
# ---------------------------------------------------------------------------
def valuenet_rollout(prepped, tokens, h0, c0, *, time_block=8, batch_shards=1):
    """tokens: (T, B) int32; h0/c0: (3, B, H) f32.
    Returns logits (T, B, n_objs, V) and final (h, c) each (3, B, H)."""
    dims = prepped["dims"]
    T, B = tokens.shape
    V, H, Hp, Pp, Vn, n_objs = (dims["V"], dims["H"], dims["Hp"], dims["Pp"],
                                dims["Vn"], dims["n_objs"])

    TB = _largest_divisor_leq(T, time_block)       # time steps per grid iteration
    NT = T // TB
    Bp = _round_up(max(B, 8 * batch_shards), 8 * batch_shards)   # sublane-pad batch
    Bs = Bp // batch_shards                                      # per-shard batch (multiple of 8)
    NB = batch_shards

    tok3 = jnp.zeros((T, Bp, 1), jnp.int32).at[:, :B, 0].set(tokens.astype(jnp.int32))
    h0p = jnp.zeros((3, Bp, Hp), jnp.float32).at[:, :B, :H].set(h0)
    c0p = jnp.zeros((3, Bp, Hp), jnp.float32).at[:, :B, :H].set(c0)

    inputs = (tok3, prepped["embed"],
              prepped["wx"][0], prepped["wh"][0], prepped["b"][0],
              prepped["wx"][1], prepped["wh"][1], prepped["b"][1],
              prepped["wx"][2], prepped["wh"][2], prepped["b"][2],
              prepped["lw"], prepped["lb"],
              h0p, c0p)

    in_specs = [pl.BlockSpec((T, Bs, 1), lambda b, t: (0, b, 0))]       # tokens: resident per shard
    in_specs += [_resident_spec(a) for a in inputs[1:13]]               # weights/biases: Buffered(1)
    in_specs += [pl.BlockSpec((3, Bs, Hp), lambda b, t: (0, b, 0)),     # h0 per shard
                 pl.BlockSpec((3, Bs, Hp), lambda b, t: (0, b, 0))]     # c0 per shard

    out_specs = (
        pl.BlockSpec((TB, Bs, Pp), lambda b, t: (t, b, 0)),             # per-block logits (lane-dense)
        pl.BlockSpec((3, Bs, Hp), lambda b, t: (0, b, 0)),              # h carry (resident across t)
        pl.BlockSpec((3, Bs, Hp), lambda b, t: (0, b, 0)),              # c carry (resident across t)
    )

    kernel = functools.partial(_valuenet_kernel, TB=TB, H=H)

    logits_p, h_p, c_p = pl.pallas_call(
        kernel,
        out_shape=(
            jax.ShapeDtypeStruct((T, Bp, Pp), jnp.float32),
            jax.ShapeDtypeStruct((3, Bp, Hp), jnp.float32),
            jax.ShapeDtypeStruct((3, Bp, Hp), jnp.float32),
        ),
        grid_spec=pltpu.PrefetchScalarGridSpec(
            num_scalar_prefetch=0,
            grid=(NB, NT),
            in_specs=in_specs,
            out_specs=out_specs,
        ),
        compiler_params=pltpu.CompilerParams(
            # batch shards are independent (megacore on v7x); time recurrence is sequential.
            dimension_semantics=("parallel", "arbitrary"),
            vmem_limit_bytes=32 * 1024 * 1024,
        ),
    )(*inputs)

    logits = logits_p[:, :B, :Vn].reshape(T, B, n_objs, V)
    return logits, (h_p[:, :B, :H], c_p[:, :B, :H])


def valuenet_forward(prepped, idx, h0, c0):
    """Matches ValueNet.forward: idx (B,) int32, (h0, c0) -> (logits (B, n_objs, V), (h, c))."""
    logits, (h, c) = valuenet_rollout(prepped, idx.reshape(1, -1), h0, c0,
                                      time_block=1, batch_shards=1)
    return logits[0], (h, c)


# ---------------------------------------------------------------------------
# Plain-JAX reference mirroring the kernel numerics (bf16 matmul inputs, f32 accumulation/state).
# ---------------------------------------------------------------------------
def _reference_rollout(params, tokens, h0, c0, n_objs):
    V, E = params["embed"].shape
    H = params["whh"][0].shape[0]
    emb = params["embed"].astype(jnp.bfloat16)
    T, B = tokens.shape
    h, c = h0, c0
    logits_all = []
    for t in range(T):
        x = emb[tokens[t]].astype(jnp.float32)
        hs, cs = [], []
        for l in range(3):
            wih = params["wih"][l].astype(jnp.bfloat16)
            whh = params["whh"][l].astype(jnp.bfloat16)
            gates = (jnp.dot(x.astype(jnp.bfloat16), wih, preferred_element_type=jnp.float32)
                     + jnp.dot(h[l].astype(jnp.bfloat16), whh, preferred_element_type=jnp.float32)
                     + params["b"][l])
            i_g = jax.nn.sigmoid(gates[:, 0 * H:1 * H])
            f_g = jax.nn.sigmoid(gates[:, 1 * H:2 * H])
            g_g = jnp.tanh(gates[:, 2 * H:3 * H])
            o_g = jax.nn.sigmoid(gates[:, 3 * H:4 * H])
            c_new = f_g * c[l] + i_g * g_g
            h_new = o_g * jnp.tanh(c_new)
            hs.append(h_new)
            cs.append(c_new)
            x = h_new
        h, c = jnp.stack(hs), jnp.stack(cs)
        logits = (jnp.dot(x.astype(jnp.bfloat16), params["lw"].astype(jnp.bfloat16),
                          preferred_element_type=jnp.float32) + params["lb"])
        logits_all.append(logits.reshape(B, n_objs, V))
    return jnp.stack(logits_all), (h, c)


def init_params(key, voc_size, embed_size, hidden_size, n_objs):
    """Deterministic synthetic parameter init (shapes follow nn.Embedding/nn.LSTM/nn.Linear)."""
    ks = jax.random.split(key, 16)
    scale = 0.1
    params = {
        "embed": scale * jax.random.normal(ks[0], (voc_size, embed_size), jnp.float32),
        "wih": [], "whh": [], "b": [],
        "lw": scale * jax.random.normal(ks[1], (hidden_size, voc_size * n_objs), jnp.float32),
        "lb": scale * jax.random.normal(ks[2], (1, voc_size * n_objs), jnp.float32),
    }
    for l in range(3):
        in_dim = embed_size if l == 0 else hidden_size
        params["wih"].append(scale * jax.random.normal(ks[3 + 3 * l], (in_dim, 4 * hidden_size), jnp.float32))
        params["whh"].append(scale * jax.random.normal(ks[4 + 3 * l], (hidden_size, 4 * hidden_size), jnp.float32))
        params["b"].append(scale * jax.random.normal(ks[5 + 3 * l], (1, 4 * hidden_size), jnp.float32))
    return params


if __name__ == "__main__":
    VOC_SIZE = 16      # voc.size
    EMBED = 32         # embed_size (small-shape analogue of 128)
    HIDDEN = 32        # hidden_size (small-shape analogue of 512)
    N_OBJS = 1

    key = jax.random.PRNGKey(0)
    kp, ki, kh, kc, kt, kh2, kc2 = jax.random.split(key, 7)

    params = init_params(kp, VOC_SIZE, EMBED, HIDDEN, N_OBJS)
    prepped = prepare_params(params, N_OBJS)

    # --- single-step forward (exactly ValueNet.forward semantics) -------------------------
    BATCH = 2
    idx = jax.random.randint(ki, (BATCH,), 0, VOC_SIZE, dtype=jnp.int32)
    h0 = 0.1 * jax.random.normal(kh, (3, BATCH, HIDDEN), jnp.float32)
    c0 = 0.1 * jax.random.normal(kc, (3, BATCH, HIDDEN), jnp.float32)

    logits, (h1, c1) = valuenet_forward(prepped, idx, h0, c0)
    jax.block_until_ready((logits, h1, c1))

    ref_logits, (ref_h, ref_c) = _reference_rollout(params, idx.reshape(1, BATCH), h0, c0, N_OBJS)
    assert logits.shape == (BATCH, N_OBJS, VOC_SIZE)
    assert h1.shape == (3, BATCH, HIDDEN) and c1.shape == (3, BATCH, HIDDEN)
    assert jnp.allclose(logits, ref_logits[0], rtol=2e-3, atol=2e-3)
    assert jnp.allclose(h1, ref_h, rtol=2e-3, atol=2e-3)
    assert jnp.allclose(c1, ref_c, rtol=2e-3, atol=2e-3)

    # --- multi-step rollout: time-blocked (TB=4) + batch-sharded (2 shards of 8 rows) -----
    T_ROLL, B_ROLL = 8, 16
    tokens = jax.random.randint(kt, (T_ROLL, B_ROLL), 0, VOC_SIZE, dtype=jnp.int32)
    h0b = 0.1 * jax.random.normal(kh2, (3, B_ROLL, HIDDEN), jnp.float32)
    c0b = 0.1 * jax.random.normal(kc2, (3, B_ROLL, HIDDEN), jnp.float32)

    logits_T, (hT, cT) = valuenet_rollout(prepped, tokens, h0b, c0b,
                                          time_block=4, batch_shards=2)
    jax.block_until_ready((logits_T, hT, cT))

    ref_lT, (ref_hT, ref_cT) = _reference_rollout(params, tokens, h0b, c0b, N_OBJS)
    assert logits_T.shape == (T_ROLL, B_ROLL, N_OBJS, VOC_SIZE)
    assert jnp.allclose(logits_T, ref_lT, rtol=2e-3, atol=2e-3)
    assert jnp.allclose(hT, ref_hT, rtol=2e-3, atol=2e-3)
    assert jnp.allclose(cT, ref_cT, rtol=2e-3, atol=2e-3)

    print("KERNEL_OK")
</pallas_src>

<mosaic_0001>
module attributes {stable_mosaic.version = 11 : i64} {
  func.func @_valuenet_kernel(%arg0: i32, %arg1: i32, %arg2: memref<1x8x1xi32, #tpu.memory_space<vmem>>, %arg3: memref<16x128xbf16, #tpu.memory_space<vmem>>, %arg4: memref<128x512xbf16, #tpu.memory_space<vmem>>, %arg5: memref<128x512xbf16, #tpu.memory_space<vmem>>, %arg6: memref<1x512xf32, #tpu.memory_space<vmem>>, %arg7: memref<128x512xbf16, #tpu.memory_space<vmem>>, %arg8: memref<128x512xbf16, #tpu.memory_space<vmem>>, %arg9: memref<1x512xf32, #tpu.memory_space<vmem>>, %arg10: memref<128x512xbf16, #tpu.memory_space<vmem>>, %arg11: memref<128x512xbf16, #tpu.memory_space<vmem>>, %arg12: memref<1x512xf32, #tpu.memory_space<vmem>>, %arg13: memref<128x128xbf16, #tpu.memory_space<vmem>>, %arg14: memref<1x128xf32, #tpu.memory_space<vmem>>, %arg15: memref<3x8x128xf32, #tpu.memory_space<vmem>>, %arg16: memref<3x8x128xf32, #tpu.memory_space<vmem>>, %arg17: memref<1x8x128xf32, #tpu.memory_space<vmem>>, %arg18: memref<3x8x128xf32, #tpu.memory_space<vmem>>, %arg19: memref<3x8x128xf32, #tpu.memory_space<vmem>>) attributes {dimension_semantics = [#tpu.dimension_semantics<parallel>, #tpu.dimension_semantics<arbitrary>], iteration_bounds = array<i64: 1, 1>, scalar_prefetch = 0 : i64, scratch_operands = 0 : i64, tpu.core_type = #tpu.core_type<tc>, window_params = [{transform_indices = @transform_0, window_bounds = array<i64: 1, 8, 1>}, {pipeline_mode = #tpu.pipeline_mode<synchronous>, transform_indices = @transform_1, window_bounds = array<i64: 16, 128>}, {pipeline_mode = #tpu.pipeline_mode<synchronous>, transform_indices = @transform_2, window_bounds = array<i64: 128, 512>}, {pipeline_mode = #tpu.pipeline_mode<synchronous>, transform_indices = @transform_3, window_bounds = array<i64: 128, 512>}, {pipeline_mode = #tpu.pipeline_mode<synchronous>, transform_indices = @transform_4, window_bounds = array<i64: 1, 512>}, {pipeline_mode = #tpu.pipeline_mode<synchronous>, transform_indices = @transform_5, window_bounds = array<i64: 128, 512>}, {pipeline_mode = #tpu.pipeline_mode<synchronous>, transform_indices = @transform_6, window_bounds = array<i64: 128, 512>}, {pipeline_mode = #tpu.pipeline_mode<synchronous>, transform_indices = @transform_7, window_bounds = array<i64: 1, 512>}, {pipeline_mode = #tpu.pipeline_mode<synchronous>, transform_indices = @transform_8, window_bounds = array<i64: 128, 512>}, {pipeline_mode = #tpu.pipeline_mode<synchronous>, transform_indices = @transform_9, window_bounds = array<i64: 128, 512>}, {pipeline_mode = #tpu.pipeline_mode<synchronous>, transform_indices = @transform_10, window_bounds = array<i64: 1, 512>}, {pipeline_mode = #tpu.pipeline_mode<synchronous>, transform_indices = @transform_11, window_bounds = array<i64: 128, 128>}, {pipeline_mode = #tpu.pipeline_mode<synchronous>, transform_indices = @transform_12, window_bounds = array<i64: 1, 128>}, {transform_indices = @transform_13, window_bounds = array<i64: 3, 8, 128>}, {transform_indices = @transform_14, window_bounds = array<i64: 3, 8, 128>}, {transform_indices = @transform_15, window_bounds = array<i64: 1, 8, 128>}, {transform_indices = @transform_16, window_bounds = array<i64: 3, 8, 128>}, {transform_indices = @transform_17, window_bounds = array<i64: 3, 8, 128>}]} {
    %c0_i32 = arith.constant 0 : i32
    %0 = arith.cmpi eq, %arg1, %c0_i32 : i32
    %1 = arith.extui %0 : i1 to i32
    %c0_i32_0 = arith.constant 0 : i32
    %2 = arith.cmpi ne, %1, %c0_i32_0 : i32
    scf.if %2 {
      %161 = tpu.iota {dimensions = array<i32: 2>} : vector<1x1x128xi32>
      %c32_i32 = arith.constant 32 : i32
      %162 = vector.broadcast %c32_i32 : i32 to vector<1x1x128xi32>
      %163 = arith.cmpi slt, %161, %162 : vector<1x1x128xi32>
      %164 = arith.extui %163 : vector<1x1x128xi1> to vector<1x1x128xi32>
      %165 = arith.sitofp %164 : vector<1x1x128xi32> to vector<1x1x128xf32>
      %c0_80 = arith.constant 0 : index
      %c0_81 = arith.constant 0 : index
      %c0_82 = arith.constant 0 : index
      %166 = vector.load %arg15[%c0_80, %c0_81, %c0_82] : memref<3x8x128xf32, #tpu.memory_space<vmem>>, vector<3x8x128xf32>
      %167 = vector.broadcast %165 : vector<1x1x128xf32> to vector<3x8x128xf32>
      %168 = arith.mulf %166, %167 : vector<3x8x128xf32>
      %c0_83 = arith.constant 0 : index
      %c0_84 = arith.constant 0 : index
      %c0_85 = arith.constant 0 : index
      %169 = vector.load %arg18[%c0_83, %c0_84, %c0_85] : memref<3x8x128xf32, #tpu.memory_space<vmem>>, vector<3x8x128xf32>
      tpu.vector_store %arg18[%c0_83, %c0_84, %c0_85], %168 {strides = array<i32>} : memref<3x8x128xf32, #tpu.memory_space<vmem>>, vector<3x8x128xf32>,
      %c0_86 = arith.constant 0 : index
      %c0_87 = arith.constant 0 : index
      %c0_88 = arith.constant 0 : index
      %170 = vector.load %arg16[%c0_86, %c0_87, %c0_88] : memref<3x8x128xf32, #tpu.memory_space<vmem>>, vector<3x8x128xf32>
      %171 = vector.broadcast %165 : vector<1x1x128xf32> to vector<3x8x128xf32>
      %172 = arith.mulf %170, %171 : vector<3x8x128xf32>
      %c0_89 = arith.constant 0 : index
      %c0_90 = arith.constant 0 : index
      %c0_91 = arith.constant 0 : index
      %173 = vector.load %arg19[%c0_89, %c0_90, %c0_91] : memref<3x8x128xf32, #tpu.memory_space<vmem>>, vector<3x8x128xf32>
      tpu.vector_store %arg19[%c0_89, %c0_90, %c0_91], %172 {strides = array<i32>} : memref<3x8x128xf32, #tpu.memory_space<vmem>>, vector<3x8x128xf32>,
    } else {
    }
    %c1_i32 = arith.constant 1 : i32
    %3 = arith.muli %arg1, %c1_i32 : i32
    %4 = tpu.assume_multiple %3, 1 : i32
    %c0_i32_1 = arith.constant 0 : i32
    %5 = arith.addi %4, %c0_i32_1 : i32
    %6 = arith.index_cast %5 : i32 to index
    %c0 = arith.constant 0 : index
    %c0_2 = arith.constant 0 : index
    %7 = vector.load %arg2[%6, %c0, %c0_2] : memref<1x8x1xi32, #tpu.memory_space<vmem>>, vector<1x8x1xi32>
    %8 = vector.shape_cast %7 : vector<1x8x1xi32> to vector<8x1xi32>
    %9 = tpu.iota {dimensions = array<i32: 1>} : vector<8x16xi32>
    %10 = vector.broadcast %8 : vector<8x1xi32> to vector<8x16xi32>
    %11 = arith.cmpi eq, %9, %10 : vector<8x16xi32>
    %12 = arith.extui %11 : vector<8x16xi1> to vector<8x16xi32>
    %13 = arith.sitofp %12 : vector<8x16xi32> to vector<8x16xf32>
    %14 = arith.truncf %13 : vector<8x16xf32> to vector<8x16xbf16>
    %c0_3 = arith.constant 0 : index
    %c0_4 = arith.constant 0 : index
    %15 = vector.load %arg3[%c0_3, %c0_4] : memref<16x128xbf16, #tpu.memory_space<vmem>>, vector<16x128xbf16>
    %cst = arith.constant dense<0.000000e+00> : vector<8x128xf32>
    %16 = tpu.matmul %14, %15, %cst {dimension_numbers = #tpu.dot_dimension_numbers<[1], [0], [0], [1], [0, 0, 1, 1], [], []>} : vector<8x16xbf16>, vector<16x128xbf16>, vector<8x128xf32> -> vector<8x128xf32>
    %c0_5 = arith.constant 0 : index
    %c0_6 = arith.constant 0 : index
    %c0_7 = arith.constant 0 : index
    %17 = vector.load %arg18[%c0_5, %c0_6, %c0_7] : memref<3x8x128xf32, #tpu.memory_space<vmem>>, vector<1x8x128xf32>
    %18 = vector.shape_cast %17 : vector<1x8x128xf32> to vector<8x128xf32>
    %c0_8 = arith.constant 0 : index
    %c0_9 = arith.constant 0 : index
    %c0_10 = arith.constant 0 : index
    %19 = vector.load %arg19[%c0_8, %c0_9, %c0_10] : memref<3x8x128xf32, #tpu.memory_space<vmem>>, vector<1x8x128xf32>
    %20 = vector.shape_cast %19 : vector<1x8x128xf32> to vector<8x128xf32>
    %21 = arith.truncf %16 : vector<8x128xf32> to vector<8x128xbf16>
    %c0_11 = arith.constant 0 : index
    %c0_12 = arith.constant 0 : index
    %22 = vector.load %arg4[%c0_11, %c0_12] : memref<128x512xbf16, #tpu.memory_space<vmem>>, vector<128x512xbf16>
    %cst_13 = arith.constant dense<0.000000e+00> : vector<8x512xf32>
    %23 = tpu.matmul %21, %22, %cst_13 {dimension_numbers = #tpu.dot_dimension_numbers<[1], [0], [0], [1], [0, 0, 1, 1], [], []>} : vector<8x128xbf16>, vector<128x512xbf16>, vector<8x512xf32> -> vector<8x512xf32>
    %24 = arith.truncf %18 : vector<8x128xf32> to vector<8x128xbf16>
    %c0_14 = arith.constant 0 : index
    %c0_15 = arith.constant 0 : index
    %25 = vector.load %arg5[%c0_14, %c0_15] : memref<128x512xbf16, #tpu.memory_space<vmem>>, vector<128x512xbf16>
    %cst_16 = arith.constant dense<0.000000e+00> : vector<8x512xf32>
    %26 = tpu.matmul %24, %25, %cst_16 {dimension_numbers = #tpu.dot_dimension_numbers<[1], [0], [0], [1], [0, 0, 1, 1], [], []>} : vector<8x128xbf16>, vector<128x512xbf16>, vector<8x512xf32> -> vector<8x512xf32>
    %27 = arith.addf %23, %26 : vector<8x512xf32>
    %c0_17 = arith.constant 0 : index
    %c0_18 = arith.constant 0 : index
    %28 = vector.load %arg6[%c0_17, %c0_18] : memref<1x512xf32, #tpu.memory_space<vmem>>, vector<1x512xf32>
    %29 = vector.broadcast %28 : vector<1x512xf32> to vector<8x512xf32>
    %30 = arith.addf %27, %29 : vector<8x512xf32>
    %31 = vector.extract_strided_slice %30 {offsets = [0, 0], sizes = [8, 128], strides = [1, 1]} : vector<8x512xf32> to vector<8x128xf32>
    %32 = arith.negf %31 : vector<8x128xf32>
    %33 = math.exp %32 : vector<8x128xf32>
    %cst_19 = arith.constant 1.000000e+00 : f32
    %34 = vector.broadcast %cst_19 : f32 to vector<8x128xf32>
    %35 = arith.addf %34, %33 : vector<8x128xf32>
    %36 = arith.divf %34, %35 : vector<8x128xf32>
    %37 = vector.extract_strided_slice %30 {offsets = [0, 128], sizes = [8, 128], strides = [1, 1]} : vector<8x512xf32> to vector<8x128xf32>
    %38 = arith.negf %37 : vector<8x128xf32>
    %39 = math.exp %38 : vector<8x128xf32>
    %cst_20 = arith.constant 1.000000e+00 : f32
    %40 = vector.broadcast %cst_20 : f32 to vector<8x128xf32>
    %41 = arith.addf %40, %39 : vector<8x128xf32>
    %42 = arith.divf %40, %41 : vector<8x128xf32>
    %43 = vector.extract_strided_slice %30 {offsets = [0, 256], sizes = [8, 128], strides = [1, 1]} : vector<8x512xf32> to vector<8x128xf32>
    %44 = math.tanh %43 : vector<8x128xf32>
    %45 = vector.extract_strided_slice %30 {offsets = [0, 384], sizes = [8, 128], strides = [1, 1]} : vector<8x512xf32> to vector<8x128xf32>
    %46 = arith.negf %45 : vector<8x128xf32>
    %47 = math.exp %46 : vector<8x128xf32>
    %cst_21 = arith.constant 1.000000e+00 : f32
    %48 = vector.broadcast %cst_21 : f32 to vector<8x128xf32>
    %49 = arith.addf %48, %47 : vector<8x128xf32>
    %50 = arith.divf %48, %49 : vector<8x128xf32>
    %51 = arith.mulf %42, %20 : vector<8x128xf32>
    %52 = arith.mulf %36, %44 : vector<8x128xf32>
    %53 = arith.addf %51, %52 : vector<8x128xf32>
    %54 = math.tanh %53 : vector<8x128xf32>
    %55 = arith.mulf %50, %54 : vector<8x128xf32>
    %c0_22 = arith.constant 0 : index
    %c0_23 = arith.constant 0 : index
    %c0_24 = arith.constant 0 : index
    %56 = vector.load %arg18[%c0_22, %c0_23, %c0_24] : memref<3x8x128xf32, #tpu.memory_space<vmem>>, vector<1x8x128xf32>
    %57 = vector.shape_cast %56 : vector<1x8x128xf32> to vector<8x128xf32>
    %58 = vector.shape_cast %55 : vector<8x128xf32> to vector<1x8x128xf32>
    tpu.vector_store %arg18[%c0_22, %c0_23, %c0_24], %58 {strides = array<i32>} : memref<3x8x128xf32, #tpu.memory_space<vmem>>, vector<1x8x128xf32>,
    %c0_25 = arith.constant 0 : index
    %c0_26 = arith.constant 0 : index
    %c0_27 = arith.constant 0 : index
    %59 = vector.load %arg19[%c0_25, %c0_26, %c0_27] : memref<3x8x128xf32, #tpu.memory_space<vmem>>, vector<1x8x128xf32>
    %60 = vector.shape_cast %59 : vector<1x8x128xf32> to vector<8x128xf32>
    %61 = vector.shape_cast %53 : vector<8x128xf32> to vector<1x8x128xf32>
    tpu.vector_store %arg19[%c0_25, %c0_26, %c0_27], %61 {strides = array<i32>} : memref<3x8x128xf32, #tpu.memory_space<vmem>>, vector<1x8x128xf32>,
    %c1 = arith.constant 1 : index
    %c0_28 = arith.constant 0 : index
    %c0_29 = arith.constant 0 : index
    %62 = vector.load %arg18[%c1, %c0_28, %c0_29] : memref<3x8x128xf32, #tpu.memory_space<vmem>>, vector<1x8x128xf32>
    %63 = vector.shape_cast %62 : vector<1x8x128xf32> to vector<8x128xf32>
    %c1_30 = arith.constant 1 : index
    %c0_31 = arith.constant 0 : index
    %c0_32 = arith.constant 0 : index
    %64 = vector.load %arg19[%c1_30, %c0_31, %c0_32] : memref<3x8x128xf32, #tpu.memory_space<vmem>>, vector<1x8x128xf32>
    %65 = vector.shape_cast %64 : vector<1x8x128xf32> to vector<8x128xf32>
    %66 = arith.truncf %55 : vector<8x128xf32> to vector<8x128xbf16>
    %c0_33 = arith.constant 0 : index
    %c0_34 = arith.constant 0 : index
    %67 = vector.load %arg7[%c0_33, %c0_34] : memref<128x512xbf16, #tpu.memory_space<vmem>>, vector<128x512xbf16>
    %cst_35 = arith.constant dense<0.000000e+00> : vector<8x512xf32>
    %68 = tpu.matmul %66, %67, %cst_35 {dimension_numbers = #tpu.dot_dimension_numbers<[1], [0], [0], [1], [0, 0, 1, 1], [], []>} : vector<8x128xbf16>, vector<128x512xbf16>, vector<8x512xf32> -> vector<8x512xf32>
    %69 = arith.truncf %63 : vector<8x128xf32> to vector<8x128xbf16>
    %c0_36 = arith.constant 0 : index
    %c0_37 = arith.constant 0 : index
    %70 = vector.load %arg8[%c0_36, %c0_37] : memref<128x512xbf16, #tpu.memory_space<vmem>>, vector<128x512xbf16>
    %cst_38 = arith.constant dense<0.000000e+00> : vector<8x512xf32>
    %71 = tpu.matmul %69, %70, %cst_38 {dimension_numbers = #tpu.dot_dimension_numbers<[1], [0], [0], [1], [0, 0, 1, 1], [], []>} : vector<8x128xbf16>, vector<128x512xbf16>, vector<8x512xf32> -> vector<8x512xf32>
    %72 = arith.addf %68, %71 : vector<8x512xf32>
    %c0_39 = arith.constant 0 : index
    %c0_40 = arith.constant 0 : index
    %73 = vector.load %arg9[%c0_39, %c0_40] : memref<1x512xf32, #tpu.memory_space<vmem>>, vector<1x512xf32>
    %74 = vector.broadcast %73 : vector<1x512xf32> to vector<8x512xf32>
    %75 = arith.addf %72, %74 : vector<8x512xf32>
    %76 = vector.extract_strided_slice %75 {offsets = [0, 0], sizes = [8, 128], strides = [1, 1]} : vector<8x512xf32> to vector<8x128xf32>
    %77 = arith.negf %76 : vector<8x128xf32>
    %78 = math.exp %77 : vector<8x128xf32>
    %cst_41 = arith.constant 1.000000e+00 : f32
    %79 = vector.broadcast %cst_41 : f32 to vector<8x128xf32>
    %80 = arith.addf %79, %78 : vector<8x128xf32>
    %81 = arith.divf %79, %80 : vector<8x128xf32>
    %82 = vector.extract_strided_slice %75 {offsets = [0, 128], sizes = [8, 128], strides = [1, 1]} : vector<8x512xf32> to vector<8x128xf32>
    %83 = arith.negf %82 : vector<8x128xf32>
    %84 = math.exp %83 : vector<8x128xf32>
    %cst_42 = arith.constant 1.000000e+00 : f32
    %85 = vector.broadcast %cst_42 : f32 to vector<8x128xf32>
    %86 = arith.addf %85, %84 : vector<8x128xf32>
    %87 = arith.divf %85, %86 : vector<8x128xf32>
    %88 = vector.extract_strided_slice %75 {offsets = [0, 256], sizes = [8, 128], strides = [1, 1]} : vector<8x512xf32> to vector<8x128xf32>
    %89 = math.tanh %88 : vector<8x128xf32>
    %90 = vector.extract_strided_slice %75 {offsets = [0, 384], sizes = [8, 128], strides = [1, 1]} : vector<8x512xf32> to vector<8x128xf32>
    %91 = arith.negf %90 : vector<8x128xf32>
    %92 = math.exp %91 : vector<8x128xf32>
    %cst_43 = arith.constant 1.000000e+00 : f32
    %93 = vector.broadcast %cst_43 : f32 to vector<8x128xf32>
    %94 = arith.addf %93, %92 : vector<8x128xf32>
    %95 = arith.divf %93, %94 : vector<8x128xf32>
    %96 = arith.mulf %87, %65 : vector<8x128xf32>
    %97 = arith.mulf %81, %89 : vector<8x128xf32>
    %98 = arith.addf %96, %97 : vector<8x128xf32>
    %99 = math.tanh %98 : vector<8x128xf32>
    %100 = arith.mulf %95, %99 : vector<8x128xf32>
    %c1_44 = arith.constant 1 : index
    %c0_45 = arith.constant 0 : index
    %c0_46 = arith.constant 0 : index
    %101 = vector.load %arg18[%c1_44, %c0_45, %c0_46] : memref<3x8x128xf32, #tpu.memory_space<vmem>>, vector<1x8x128xf32>
    %102 = vector.shape_cast %101 : vector<1x8x128xf32> to vector<8x128xf32>
    %103 = vector.shape_cast %100 : vector<8x128xf32> to vector<1x8x128xf32>
    tpu.vector_store %arg18[%c1_44, %c0_45, %c0_46], %103 {strides = array<i32>} : memref<3x8x128xf32, #tpu.memory_space<vmem>>, vector<1x8x128xf32>,
    %c1_47 = arith.constant 1 : index
    %c0_48 = arith.constant 0 : index
    %c0_49 = arith.constant 0 : index
    %104 = vector.load %arg19[%c1_47, %c0_48, %c0_49] : memref<3x8x128xf32, #tpu.memory_space<vmem>>, vector<1x8x128xf32>
    %105 = vector.shape_cast %104 : vector<1x8x128xf32> to vector<8x128xf32>
    %106 = vector.shape_cast %98 : vector<8x128xf32> to vector<1x8x128xf32>
    tpu.vector_store %arg19[%c1_47, %c0_48, %c0_49], %106 {strides = array<i32>} : memref<3x8x128xf32, #tpu.memory_space<vmem>>, vector<1x8x128xf32>,
    %c2 = arith.constant 2 : index
    %c0_50 = arith.constant 0 : index
    %c0_51 = arith.constant 0 : index
    %107 = vector.load %arg18[%c2, %c0_50, %c0_51] : memref<3x8x128xf32, #tpu.memory_space<vmem>>, vector<1x8x128xf32>
    %108 = vector.shape_cast %107 : vector<1x8x128xf32> to vector<8x128xf32>
    %c2_52 = arith.constant 2 : index
    %c0_53 = arith.constant 0 : index
    %c0_54 = arith.constant 0 : index
    %109 = vector.load %arg19[%c2_52, %c0_53, %c0_54] : memref<3x8x128xf32, #tpu.memory_space<vmem>>, vector<1x8x128xf32>
    %110 = vector.shape_cast %109 : vector<1x8x128xf32> to vector<8x128xf32>
    %111 = arith.truncf %100 : vector<8x128xf32> to vector<8x128xbf16>
    %c0_55 = arith.constant 0 : index
    %c0_56 = arith.constant 0 : index
    %112 = vector.load %arg10[%c0_55, %c0_56] : memref<128x512xbf16, #tpu.memory_space<vmem>>, vector<128x512xbf16>
    %cst_57 = arith.constant dense<0.000000e+00> : vector<8x512xf32>
    %113 = tpu.matmul %111, %112, %cst_57 {dimension_numbers = #tpu.dot_dimension_numbers<[1], [0], [0], [1], [0, 0, 1, 1], [], []>} : vector<8x128xbf16>, vector<128x512xbf16>, vector<8x512xf32> -> vector<8x512xf32>
    %114 = arith.truncf %108 : vector<8x128xf32> to vector<8x128xbf16>
    %c0_58 = arith.constant 0 : index
    %c0_59 = arith.constant 0 : index
    %115 = vector.load %arg11[%c0_58, %c0_59] : memref<128x512xbf16, #tpu.memory_space<vmem>>, vector<128x512xbf16>
    %cst_60 = arith.constant dense<0.000000e+00> : vector<8x512xf32>
    %116 = tpu.matmul %114, %115, %cst_60 {dimension_numbers = #tpu.dot_dimension_numbers<[1], [0], [0], [1], [0, 0, 1, 1], [], []>} : vector<8x128xbf16>, vector<128x512xbf16>, vector<8x512xf32> -> vector<8x512xf32>
    %117 = arith.addf %113, %116 : vector<8x512xf32>
    %c0_61 = arith.constant 0 : index
    %c0_62 = arith.constant 0 : index
    %118 = vector.load %arg12[%c0_61, %c0_62] : memref<1x512xf32, #tpu.memory_space<vmem>>, vector<1x512xf32>
    %119 = vector.broadcast %118 : vector<1x512xf32> to vector<8x512xf32>
    %120 = arith.addf %117, %119 : vector<8x512xf32>
    %121 = vector.extract_strided_slice %120 {offsets = [0, 0], sizes = [8, 128], strides = [1, 1]} : vector<8x512xf32> to vector<8x128xf32>
    %122 = arith.negf %121 : vector<8x128xf32>
    %123 = math.exp %122 : vector<8x128xf32>
    %cst_63 = arith.constant 1.000000e+00 : f32
    %124 = vector.broadcast %cst_63 : f32 to vector<8x128xf32>
    %125 = arith.addf %124, %123 : vector<8x128xf32>
    %126 = arith.divf %124, %125 : vector<8x128xf32>
    %127 = vector.extract_strided_slice %120 {offsets = [0, 128], sizes = [8, 128], strides = [1, 1]} : vector<8x512xf32> to vector<8x128xf32>
    %128 = arith.negf %127 : vector<8x128xf32>
    %129 = math.exp %128 : vector<8x128xf32>
    %cst_64 = arith.constant 1.000000e+00 : f32
    %130 = vector.broadcast %cst_64 : f32 to vector<8x128xf32>
    %131 = arith.addf %130, %129 : vector<8x128xf32>
    %132 = arith.divf %130, %131 : vector<8x128xf32>
    %133 = vector.extract_strided_slice %120 {offsets = [0, 256], sizes = [8, 128], strides = [1, 1]} : vector<8x512xf32> to vector<8x128xf32>
    %134 = math.tanh %133 : vector<8x128xf32>
    %135 = vector.extract_strided_slice %120 {offsets = [0, 384], sizes = [8, 128], strides = [1, 1]} : vector<8x512xf32> to vector<8x128xf32>
    %136 = arith.negf %135 : vector<8x128xf32>
    %137 = math.exp %136 : vector<8x128xf32>
    %cst_65 = arith.constant 1.000000e+00 : f32
    %138 = vector.broadcast %cst_65 : f32 to vector<8x128xf32>
    %139 = arith.addf %138, %137 : vector<8x128xf32>
    %140 = arith.divf %138, %139 : vector<8x128xf32>
    %141 = arith.mulf %132, %110 : vector<8x128xf32>
    %142 = arith.mulf %126, %134 : vector<8x128xf32>
    %143 = arith.addf %141, %142 : vector<8x128xf32>
    %144 = math.tanh %143 : vector<8x128xf32>
    %145 = arith.mulf %140, %144 : vector<8x128xf32>
    %c2_66 = arith.constant 2 : index
    %c0_67 = arith.constant 0 : index
    %c0_68 = arith.constant 0 : index
    %146 = vector.load %arg18[%c2_66, %c0_67, %c0_68] : memref<3x8x128xf32, #tpu.memory_space<vmem>>, vector<1x8x128xf32>
    %147 = vector.shape_cast %146 : vector<1x8x128xf32> to vector<8x128xf32>
    %148 = vector.shape_cast %145 : vector<8x128xf32> to vector<1x8x128xf32>
    tpu.vector_store %arg18[%c2_66, %c0_67, %c0_68], %148 {strides = array<i32>} : memref<3x8x128xf32, #tpu.memory_space<vmem>>, vector<1x8x128xf32>,
    %c2_69 = arith.constant 2 : index
    %c0_70 = arith.constant 0 : index
    %c0_71 = arith.constant 0 : index
    %149 = vector.load %arg19[%c2_69, %c0_70, %c0_71] : memref<3x8x128xf32, #tpu.memory_space<vmem>>, vector<1x8x128xf32>
    %150 = vector.shape_cast %149 : vector<1x8x128xf32> to vector<8x128xf32>
    %151 = vector.shape_cast %143 : vector<8x128xf32> to vector<1x8x128xf32>
    tpu.vector_store %arg19[%c2_69, %c0_70, %c0_71], %151 {strides = array<i32>} : memref<3x8x128xf32, #tpu.memory_space<vmem>>, vector<1x8x128xf32>,
    %152 = arith.truncf %145 : vector<8x128xf32> to vector<8x128xbf16>
    %c0_72 = arith.constant 0 : index
    %c0_73 = arith.constant 0 : index
    %153 = vector.load %arg13[%c0_72, %c0_73] : memref<128x128xbf16, #tpu.memory_space<vmem>>, vector<128x128xbf16>
    %cst_74 = arith.constant dense<0.000000e+00> : vector<8x128xf32>
    %154 = tpu.matmul %152, %153, %cst_74 {dimension_numbers = #tpu.dot_dimension_numbers<[1], [0], [0], [1], [0, 0, 1, 1], [], []>} : vector<8x128xbf16>, vector<128x128xbf16>, vector<8x128xf32> -> vector<8x128xf32>
    %c0_75 = arith.constant 0 : index
    %c0_76 = arith.constant 0 : index
    %155 = vector.load %arg14[%c0_75, %c0_76] : memref<1x128xf32, #tpu.memory_space<vmem>>, vector<1x128xf32>
    %156 = vector.broadcast %155 : vector<1x128xf32> to vector<8x128xf32>
    %157 = arith.addf %154, %156 : vector<8x128xf32>
    %c0_77 = arith.constant 0 : index
    %c0_78 = arith.constant 0 : index
    %c0_79 = arith.constant 0 : index
    %158 = vector.load %arg17[%c0_77, %c0_78, %c0_79] : memref<1x8x128xf32, #tpu.memory_space<vmem>>, vector<1x8x128xf32>
    %159 = vector.shape_cast %158 : vector<1x8x128xf32> to vector<8x128xf32>
    %160 = vector.shape_cast %157 : vector<8x128xf32> to vector<1x8x128xf32>
    tpu.vector_store %arg17[%c0_77, %c0_78, %c0_79], %160 {strides = array<i32>} : memref<1x8x128xf32, #tpu.memory_space<vmem>>, vector<1x8x128xf32>,
    return
  }
  func.func @transform_0(%arg0: i32, %arg1: i32) -> (i32, i32, i32) {
    %c0_i32 = arith.constant 0 : i32
    %c0_i32_0 = arith.constant 0 : i32
    %c0_i32_1 = arith.constant 0 : i32
    return %c0_i32, %arg0, %c0_i32_0 : i32, i32, i32
  }
  func.func @transform_1(%arg0: i32, %arg1: i32) -> (i32, i32) {
    %c0_i32 = arith.constant 0 : i32
    %c0_i32_0 = arith.constant 0 : i32
    %c0_i32_1 = arith.constant 0 : i32
    return %c0_i32, %c0_i32_0 : i32, i32
  }
  func.func @transform_2(%arg0: i32, %arg1: i32) -> (i32, i32) {
    %c0_i32 = arith.constant 0 : i32
    %c0_i32_0 = arith.constant 0 : i32
    %c0_i32_1 = arith.constant 0 : i32
    return %c0_i32, %c0_i32_0 : i32, i32
  }
  func.func @transform_3(%arg0: i32, %arg1: i32) -> (i32, i32) {
    %c0_i32 = arith.constant 0 : i32
    %c0_i32_0 = arith.constant 0 : i32
    %c0_i32_1 = arith.constant 0 : i32
    return %c0_i32, %c0_i32_0 : i32, i32
  }
  func.func @transform_4(%arg0: i32, %arg1: i32) -> (i32, i32) {
    %c0_i32 = arith.constant 0 : i32
    %c0_i32_0 = arith.constant 0 : i32
    %c0_i32_1 = arith.constant 0 : i32
    return %c0_i32, %c0_i32_0 : i32, i32
  }
  func.func @transform_5(%arg0: i32, %arg1: i32) -> (i32, i32) {
    %c0_i32 = arith.constant 0 : i32
    %c0_i32_0 = arith.constant 0 : i32
    %c0_i32_1 = arith.constant 0 : i32
    return %c0_i32, %c0_i32_0 : i32, i32
  }
  func.func @transform_6(%arg0: i32, %arg1: i32) -> (i32, i32) {
    %c0_i32 = arith.constant 0 : i32
    %c0_i32_0 = arith.constant 0 : i32
    %c0_i32_1 = arith.constant 0 : i32
    return %c0_i32, %c0_i32_0 : i32, i32
  }
  func.func @transform_7(%arg0: i32, %arg1: i32) -> (i32, i32) {
    %c0_i32 = arith.constant 0 : i32
    %c0_i32_0 = arith.constant 0 : i32
    %c0_i32_1 = arith.constant 0 : i32
    return %c0_i32, %c0_i32_0 : i32, i32
  }
  func.func @transform_8(%arg0: i32, %arg1: i32) -> (i32, i32) {
    %c0_i32 = arith.constant 0 : i32
    %c0_i32_0 = arith.constant 0 : i32
    %c0_i32_1 = arith.constant 0 : i32
    return %c0_i32, %c0_i32_0 : i32, i32
  }
  func.func @transform_9(%arg0: i32, %arg1: i32) -> (i32, i32) {
    %c0_i32 = arith.constant 0 : i32
    %c0_i32_0 = arith.constant 0 : i32
    %c0_i32_1 = arith.constant 0 : i32
    return %c0_i32, %c0_i32_0 : i32, i32
  }
  func.func @transform_10(%arg0: i32, %arg1: i32) -> (i32, i32) {
    %c0_i32 = arith.constant 0 : i32
    %c0_i32_0 = arith.constant 0 : i32
    %c0_i32_1 = arith.constant 0 : i32
    return %c0_i32, %c0_i32_0 : i32, i32
  }
  func.func @transform_11(%arg0: i32, %arg1: i32) -> (i32, i32) {
    %c0_i32 = arith.constant 0 : i32
    %c0_i32_0 = arith.constant 0 : i32
    %c0_i32_1 = arith.constant 0 : i32
    return %c0_i32, %c0_i32_0 : i32, i32
  }
  func.func @transform_12(%arg0: i32, %arg1: i32) -> (i32, i32) {
    %c0_i32 = arith.constant 0 : i32
    %c0_i32_0 = arith.constant 0 : i32
    %c0_i32_1 = arith.constant 0 : i32
    return %c0_i32, %c0_i32_0 : i32, i32
  }
  func.func @transform_13(%arg0: i32, %arg1: i32) -> (i32, i32, i32) {
    %c0_i32 = arith.constant 0 : i32
    %c0_i32_0 = arith.constant 0 : i32
    %c0_i32_1 = arith.constant 0 : i32
    return %c0_i32, %arg0, %c0_i32_0 : i32, i32, i32
  }
  func.func @transform_14(%arg0: i32, %arg1: i32) -> (i32, i32, i32) {
    %c0_i32 = arith.constant 0 : i32
    %c0_i32_0 = arith.constant 0 : i32
    %c0_i32_1 = arith.constant 0 : i32
    return %c0_i32, %arg0, %c0_i32_0 : i32, i32, i32
  }
  func.func @transform_15(%arg0: i32, %arg1: i32) -> (i32, i32, i32) {
    %c0_i32 = arith.constant 0 : i32
    %c0_i32_0 = arith.constant 0 : i32
    return %arg1, %arg0, %c0_i32 : i32, i32, i32
  }
  func.func @transform_16(%arg0: i32, %arg1: i32) -> (i32, i32, i32) {
    %c0_i32 = arith.constant 0 : i32
    %c0_i32_0 = arith.constant 0 : i32
    %c0_i32_1 = arith.constant 0 : i32
    return %c0_i32, %arg0, %c0_i32_0 : i32, i32, i32
  }
  func.func @transform_17(%arg0: i32, %arg1: i32) -> (i32, i32, i32) {
    %c0_i32 = arith.constant 0 : i32
    %c0_i32_0 = arith.constant 0 : i32
    %c0_i32_1 = arith.constant 0 : i32
    return %c0_i32, %arg0, %c0_i32_0 : i32, i32, i32
  }
}

</mosaic_0001>

<llo_original>
// kernel: tpu_custom_call.1
$region0: #{tpu_custom_call.1}
  #allocation0 [shape = 'u32[]', space=smem, size = 0x4, offset = 0x4, fixed_abs, tag = 'smem constant byte address 0x4 - core index']
  #allocation1 [shape = 'u32[144,128]{1,0:T(1,128)}', space=vmem, size = 0x12000, scoped, tag = 'internal scratch']
  %s0 = inlined_call_operand.vmem [shape: s32[1,8,1], index: 0, kind: input, shape index: {}]
  %s1 = inlined_call_operand.hbm [shape: bf16[16,128], index: 1, kind: input, shape index: {}]
  %s2 = inlined_call_operand.hbm [shape: bf16[128,512], index: 2, kind: input, shape index: {}]
  %s3 = inlined_call_operand.hbm [shape: bf16[128,512], index: 3, kind: input, shape index: {}]
  %s4 = inlined_call_operand.hbm [shape: f32[1,512], index: 4, kind: input, shape index: {}]
  %s5 = inlined_call_operand.hbm [shape: bf16[128,512], index: 5, kind: input, shape index: {}]
  %s6 = inlined_call_operand.hbm [shape: bf16[128,512], index: 6, kind: input, shape index: {}]
  %s7 = inlined_call_operand.hbm [shape: f32[1,512], index: 7, kind: input, shape index: {}]
  %s8 = inlined_call_operand.hbm [shape: bf16[128,512], index: 8, kind: input, shape index: {}]
  %s9 = inlined_call_operand.hbm [shape: bf16[128,512], index: 9, kind: input, shape index: {}]
  %s10 = inlined_call_operand.hbm [shape: f32[1,512], index: 10, kind: input, shape index: {}]
  %s11 = inlined_call_operand.hbm [shape: bf16[128,128], index: 11, kind: input, shape index: {}]
  %s12 = inlined_call_operand.vmem [shape: f32[1,128], index: 12, kind: input, shape index: {}]
  %s13 = inlined_call_operand.vmem [shape: f32[3,8,128], index: 13, kind: input, shape index: {}]
  %s14 = inlined_call_operand.vmem [shape: f32[3,8,128], index: 14, kind: input, shape index: {}]
  %s15 = inlined_call_operand.hbm [shape: f32[1,8,128], index: 15, kind: output, shape index: {0}]
  %s16 = inlined_call_operand.hbm [shape: f32[3,8,128], index: 16, kind: output, shape index: {1}]
  %s17 = inlined_call_operand.hbm [shape: f32[3,8,128], index: 17, kind: output, shape index: {2}]
  %18 = xla_tuple %s15, %s16, %s17
  %s19 = sld [smem:[#allocation0]]
  $region134: #{tpu_custom_call.1} parent=0
    _
  %s21 = ssub.s32 1, %s19
  %s22 = scalar_select 0, %s21, %s19
  $region1: #{tpu_custom_call.1} parent=0
    #allocation2 [shape = 'u8[4096]{0}', space=vmem, size = 0x1000, scoped, tag = 'input window, operand 1, single buffered']
    #allocation3 [shape = 's32[1]{0}', space=sflag, size = 0x4, scoped, tag = 'scoped memory for tpu_custom_call.1']
    #allocation4 [shape = 's32[1]{0}', space=sflag, size = 0x4, scoped, tag = 'scoped memory for tpu_custom_call.1']
    #allocation5 [shape = 'u8[131072]{0}', space=vmem, size = 0x20000, scoped, tag = 'input window, operand 2, single buffered']
    #allocation6 [shape = 's32[1]{0}', space=sflag, size = 0x4, scoped, tag = 'scoped memory for tpu_custom_call.1']
    #allocation7 [shape = 'u8[131072]{0}', space=vmem, size = 0x20000, scoped, tag = 'input window, operand 3, single buffered']
    #allocation8 [shape = 'u8[2048]{0}', space=vmem, size = 0x800, scoped, tag = 'input window, operand 4, single buffered']
    #allocation9 [shape = 's32[1]{0}', space=sflag, size = 0x4, scoped, tag = 'scoped memory for tpu_custom_call.1']
    #allocation10 [shape = 'u8[131072]{0}', space=vmem, size = 0x20000, scoped, tag = 'input window, operand 5, single buffered']
    #allocation11 [shape = 'u8[131072]{0}', space=vmem, size = 0x20000, scoped, tag = 'input window, operand 6, single buffered']
    #allocation12 [shape = 's32[1]{0}', space=sflag, size = 0x4, scoped, tag = 'scoped memory for tpu_custom_call.1']
    #allocation13 [shape = 'u8[2048]{0}', space=vmem, size = 0x800, scoped, tag = 'input window, operand 7, single buffered']
    #allocation14 [shape = 'u8[131072]{0}', space=vmem, size = 0x20000, scoped, tag = 'input window, operand 8, single buffered']
    #allocation15 [shape = 's32[1]{0}', space=sflag, size = 0x4, scoped, tag = 'scoped memory for tpu_custom_call.1']
    #allocation16 [shape = 'u8[131072]{0}', space=vmem, size = 0x20000, scoped, tag = 'input window, operand 9, single buffered']
    #allocation17 [shape = 'u8[2048]{0}', space=vmem, size = 0x800, scoped, tag = 'input window, operand 10, single buffered']
    #allocation18 [shape = 's32[1]{0}', space=sflag, size = 0x4, scoped, tag = 'scoped memory for tpu_custom_call.1']
    #allocation19 [shape = 'u8[32768]{0}', space=vmem, size = 0x8000, scoped, tag = 'input window, operand 11, single buffered']
    #allocation20 [shape = 'u8[4096]{0}', space=vmem, size = 0x1000, scoped, tag = 'output window, operand 0, single buffered']
    #allocation21 [shape = 'u8[12288]{0}', space=vmem, size = 0x3000, scoped, tag = 'output window, operand 1, single buffered']
    #allocation22 [shape = 's32[1]{0}', space=sflag, size = 0x4, scoped, tag = 'scoped memory for tpu_custom_call.1']
    #allocation23 [shape = 'u8[12288]{0}', space=vmem, size = 0x3000, scoped, tag = 'output window, operand 2, single buffered']
    %23 = vsyncpa [#allocation3], 0
    %24 = vsyncpa [#allocation6], 0
    %25 = vsyncpa [#allocation9], 0
    %26 = vsyncpa [#allocation12], 0
    %27 = vsyncpa [#allocation15], 0
    %28 = vsyncpa [#allocation18], 0
    %29 = vsyncpa [#allocation4], 0
    %30 = vsyncpa [#allocation22], 0
    // Predicated region
    $region2: #{tpu_custom_call.1} parent=1 // pred_check
      _
    $region3: #{tpu_custom_call.1} parent=1 // pred_check_branch
      %32 = sbr.rel (0) target = $region5
    $region4: #{tpu_custom_call.1} parent=1 // pred_region
      _
    $region5: #{tpu_custom_call.1} parent=1 // pred_fallthru
      _
    // Predicated region
    $region6: #{tpu_custom_call.1} parent=1 // pred_check
      _
    $region7: #{tpu_custom_call.1} parent=1 // pred_check_branch
      %34 = sbr.rel (0) target = $region9
    $region8: #{tpu_custom_call.1} parent=1 // pred_region
      %s36 = ssub.s32 128, 128
      %37 = vsyncadd [#allocation3], %s36
      %s38 = sshll.u32 [#allocation2], 4
      %s39 = int_to_ptr.vmem [resolvable:$true] %s38
      %44 = dma.hbm_to_vmem [thread:$0]  %s1, 128, %s39, [#allocation3], 64, 64, 4
    $region9: #{tpu_custom_call.1} parent=1 // pred_fallthru
      _
    // Predicated region
    $region10: #{tpu_custom_call.1} parent=1 // pred_check
      _
    $region11: #{tpu_custom_call.1} parent=1 // pred_check_branch
      %46 = sbr.rel (0) target = $region13
    $region12: #{tpu_custom_call.1} parent=1 // pred_region
      %s48 = ssub.s32 4096, 4096
      %49 = vsyncadd [#allocation6], %s48
      %s50 = sshll.u32 [#allocation5], 4
      %s51 = int_to_ptr.vmem [resolvable:$true] %s50
      %56 = dma.hbm_to_vmem [thread:$0]  %s2, 4096, %s51, [#allocation6], 256, 256, 16
    $region13: #{tpu_custom_call.1} parent=1 // pred_fallthru
      _
    // Predicated region
    $region14: #{tpu_custom_call.1} parent=1 // pred_check
      _
    $region15: #{tpu_custom_call.1} parent=1 // pred_check_branch
      %58 = sbr.rel (0) target = $region17
    $region16: #{tpu_custom_call.1} parent=1 // pred_region
      %s60 = ssub.s32 4096, 4096
      %61 = vsyncadd [#allocation6], %s60
      %s62 = sshll.u32 [#allocation7], 4
      %s63 = int_to_ptr.vmem [resolvable:$true] %s62
      %68 = dma.hbm_to_vmem [thread:$0]  %s3, 4096, %s63, [#allocation6], 256, 256, 16
    $region17: #{tpu_custom_call.1} parent=1 // pred_fallthru
      _
    // Predicated region
    $region18: #{tpu_custom_call.1} parent=1 // pred_check
      _
    $region19: #{tpu_custom_call.1} parent=1 // pred_check_branch
      %70 = sbr.rel (0) target = $region21
    $region20: #{tpu_custom_call.1} parent=1 // pred_region
      %s72 = ssub.s32 64, 64
      %73 = vsyncadd [#allocation9], %s72
      %s75 = sshll.u32 [#allocation8], 4
      %s76 = int_to_ptr.vmem [resolvable:$true] %s75
      %78 = dma.hbm_to_vmem [thread:$0]  %s4, 64, %s76, [#allocation9]
    $region21: #{tpu_custom_call.1} parent=1 // pred_fallthru
      _
    // Predicated region
    $region22: #{tpu_custom_call.1} parent=1 // pred_check
      _
    $region23: #{tpu_custom_call.1} parent=1 // pred_check_branch
      %80 = sbr.rel (0) target = $region25
    $region24: #{tpu_custom_call.1} parent=1 // pred_region
      %s82 = ssub.s32 4096, 4096
      %83 = vsyncadd [#allocation9], %s82
      %s84 = sshll.u32 [#allocation10], 4
      %s85 = int_to_ptr.vmem [resolvable:$true] %s84
      %90 = dma.hbm_to_vmem [thread:$0]  %s5, 4096, %s85, [#allocation9], 256, 256, 16
    $region25: #{tpu_custom_call.1} parent=1 // pred_fallthru
      _
    // Predicated region
    $region26: #{tpu_custom_call.1} parent=1 // pred_check
      _
    $region27: #{tpu_custom_call.1} parent=1 // pred_check_branch
      %92 = sbr.rel (0) target = $region29
    $region28: #{tpu_custom_call.1} parent=1 // pred_region
      %s94 = ssub.s32 4096, 4096
      %95 = vsyncadd [#allocation12], %s94
      %s96 = sshll.u32 [#allocation11], 4
      %s97 = int_to_ptr.vmem [resolvable:$true] %s96
      %102 = dma.hbm_to_vmem [thread:$0]  %s6, 4096, %s97, [#allocation12], 256, 256, 16
    $region29: #{tpu_custom_call.1} parent=1 // pred_fallthru
      _
    // Predicated region
    $region30: #{tpu_custom_call.1} parent=1 // pred_check
      _
    $region31: #{tpu_custom_call.1} parent=1 // pred_check_branch
      %104 = sbr.rel (0) target = $region33
    $region32: #{tpu_custom_call.1} parent=1 // pred_region
      %s106 = ssub.s32 64, 64
      %107 = vsyncadd [#allocation12], %s106
      %s109 = sshll.u32 [#allocation13], 4
      %s110 = int_to_ptr.vmem [resolvable:$true] %s109
      %112 = dma.hbm_to_vmem [thread:$0]  %s7, 64, %s110, [#allocation12]
    $region33: #{tpu_custom_call.1} parent=1 // pred_fallthru
      _
    // Predicated region
    $region34: #{tpu_custom_call.1} parent=1 // pred_check
      _
    $region35: #{tpu_custom_call.1} parent=1 // pred_check_branch
      %114 = sbr.rel (0) target = $region37
    $region36: #{tpu_custom_call.1} parent=1 // pred_region
      %s116 = ssub.s32 4096, 4096
      %117 = vsyncadd [#allocation15], %s116
      %s118 = sshll.u32 [#allocation14], 4
      %s119 = int_to_ptr.vmem [resolvable:$true] %s118
      %124 = dma.hbm_to_vmem [thread:$0]  %s8, 4096, %s119, [#allocation15], 256, 256, 16
    $region37: #{tpu_custom_call.1} parent=1 // pred_fallthru
      _
    // Predicated region
    $region38: #{tpu_custom_call.1} parent=1 // pred_check
      _
    $region39: #{tpu_custom_call.1} parent=1 // pred_check_branch
      %126 = sbr.rel (0) target = $region41
    $region40: #{tpu_custom_call.1} parent=1 // pred_region
      %s128 = ssub.s32 4096, 4096
      %129 = vsyncadd [#allocation15], %s128
      %s130 = sshll.u32 [#allocation16], 4
      %s131 = int_to_ptr.vmem [resolvable:$true] %s130
      %136 = dma.hbm_to_vmem [thread:$0]  %s9, 4096, %s131, [#allocation15], 256, 256, 16
    $region41: #{tpu_custom_call.1} parent=1 // pred_fallthru
      _
    // Predicated region
    $region42: #{tpu_custom_call.1} parent=1 // pred_check
      _
    $region43: #{tpu_custom_call.1} parent=1 // pred_check_branch
      %138 = sbr.rel (0) target = $region45
    $region44: #{tpu_custom_call.1} parent=1 // pred_region
      %s140 = ssub.s32 64, 64
      %141 = vsyncadd [#allocation18], %s140
      %s143 = sshll.u32 [#allocation17], 4
      %s144 = int_to_ptr.vmem [resolvable:$true] %s143
      %146 = dma.hbm_to_vmem [thread:$0]  %s10, 64, %s144, [#allocation18]
    $region45: #{tpu_custom_call.1} parent=1 // pred_fallthru
      _
    // Predicated region
    $region46: #{tpu_custom_call.1} parent=1 // pred_check
      _
    $region47: #{tpu_custom_call.1} parent=1 // pred_check_branch
      %148 = sbr.rel (0) target = $region49
    $region48: #{tpu_custom_call.1} parent=1 // pred_region
      %s150 = ssub.s32 1024, 1024
      %151 = vsyncadd [#allocation18], %s150
      %s152 = sshll.u32 [#allocation19], 4
      %s153 = int_to_ptr.vmem [resolvable:$true] %s152
      %158 = dma.hbm_to_vmem [thread:$0]  %s11, 1024, %s153, [#allocation18], 64, 64, 4
    $region49: #{tpu_custom_call.1} parent=1 // pred_fallthru
      _
    // Predicated region
    $region50: #{tpu_custom_call.1} parent=1 // pred_check
      _
    $region51: #{tpu_custom_call.1} parent=1 // pred_check_branch
      %160 = sbr.rel (0) target = $region53
    $region52: #{tpu_custom_call.1} parent=1 // pred_region
      _
    $region53: #{tpu_custom_call.1} parent=1 // pred_fallthru
      _
    // Predicated region
    $region54: #{tpu_custom_call.1} parent=1 // pred_check
      _
    $region55: #{tpu_custom_call.1} parent=1 // pred_check_branch
      %162 = sbr.rel (0) target = $region57
    $region56: #{tpu_custom_call.1} parent=1 // pred_region
      _
    $region57: #{tpu_custom_call.1} parent=1 // pred_fallthru
      _
    // Predicated region
    $region58: #{tpu_custom_call.1} parent=1 // pred_check
      _
    $region59: #{tpu_custom_call.1} parent=1 // pred_check_branch
      %164 = sbr.rel (0) target = $region61
    $region60: #{tpu_custom_call.1} parent=1 // pred_region
      _
    $region61: #{tpu_custom_call.1} parent=1 // pred_fallthru
      _
    // Predicated region
    $region62: #{tpu_custom_call.1} parent=1 // pred_check
      _
    $region63: #{tpu_custom_call.1} parent=1 // pred_check_branch
      %166 = sbr.rel (0) target = $region65
    $region64: #{tpu_custom_call.1} parent=1 // pred_region
      %167 = dma.done [#allocation3], 128
    $region65: #{tpu_custom_call.1} parent=1 // pred_fallthru
      _
    // Predicated region
    $region66: #{tpu_custom_call.1} parent=1 // pred_check
      _
    $region67: #{tpu_custom_call.1} parent=1 // pred_check_branch
      %169 = sbr.rel (0) target = $region69
    $region68: #{tpu_custom_call.1} parent=1 // pred_region
      %170 = dma.done [#allocation6], 4096
    $region69: #{tpu_custom_call.1} parent=1 // pred_fallthru
      _
    // Predicated region
    $region70: #{tpu_custom_call.1} parent=1 // pred_check
      _
    $region71: #{tpu_custom_call.1} parent=1 // pred_check_branch
      %172 = sbr.rel (0) target = $region73
    $region72: #{tpu_custom_call.1} parent=1 // pred_region
      %173 = dma.done [#allocation6], 4096
    $region73: #{tpu_custom_call.1} parent=1 // pred_fallthru
      _
    // Predicated region
    $region74: #{tpu_custom_call.1} parent=1 // pred_check
      _
    $region75: #{tpu_custom_call.1} parent=1 // pred_check_branch
      %175 = sbr.rel (0) target = $region77
    $region76: #{tpu_custom_call.1} parent=1 // pred_region
      %176 = dma.done [#allocation9], 64
    $region77: #{tpu_custom_call.1} parent=1 // pred_fallthru
      _
    // Predicated region
    $region78: #{tpu_custom_call.1} parent=1 // pred_check
      _
    $region79: #{tpu_custom_call.1} parent=1 // pred_check_branch
      %178 = sbr.rel (0) target = $region81
    $region80: #{tpu_custom_call.1} parent=1 // pred_region
      %179 = dma.done [#allocation9], 4096
    $region81: #{tpu_custom_call.1} parent=1 // pred_fallthru
      _
    // Predicated region
    $region82: #{tpu_custom_call.1} parent=1 // pred_check
      _
    $region83: #{tpu_custom_call.1} parent=1 // pred_check_branch
      %181 = sbr.rel (0) target = $region85
    $region84: #{tpu_custom_call.1} parent=1 // pred_region
      %182 = dma.done [#allocation12], 4096
    $region85: #{tpu_custom_call.1} parent=1 // pred_fallthru
      _
    // Predicated region
    $region86: #{tpu_custom_call.1} parent=1 // pred_check
      _
    $region87: #{tpu_custom_call.1} parent=1 // pred_check_branch
      %184 = sbr.rel (0) target = $region89
    $region88: #{tpu_custom_call.1} parent=1 // pred_region
      %185 = dma.done [#allocation12], 64
    $region89: #{tpu_custom_call.1} parent=1 // pred_fallthru
      _
    // Predicated region
    $region90: #{tpu_custom_call.1} parent=1 // pred_check
      _
    $region91: #{tpu_custom_call.1} parent=1 // pred_check_branch
      %187 = sbr.rel (0) target = $region93
    $region92: #{tpu_custom_call.1} parent=1 // pred_region
      %188 = dma.done [#allocation15], 4096
    $region93: #{tpu_custom_call.1} parent=1 // pred_fallthru
      _
    // Predicated region
    $region94: #{tpu_custom_call.1} parent=1 // pred_check
      _
    $region95: #{tpu_custom_call.1} parent=1 // pred_check_branch
      %190 = sbr.rel (0) target = $region97
    $region96: #{tpu_custom_call.1} parent=1 // pred_region
      %191 = dma.done [#allocation15], 4096
    $region97: #{tpu_custom_call.1} parent=1 // pred_fallthru
      _
    // Predicated region
    $region98: #{tpu_custom_call.1} parent=1 // pred_check
      _
    $region99: #{tpu_custom_call.1} parent=1 // pred_check_branch
      %193 = sbr.rel (0) target = $region101
    $region100: #{tpu_custom_call.1} parent=1 // pred_region
      %194 = dma.done [#allocation18], 64
    $region101: #{tpu_custom_call.1} parent=1 // pred_fallthru
      _
    // Predicated region
    $region102: #{tpu_custom_call.1} parent=1 // pred_check
      _
    $region103: #{tpu_custom_call.1} parent=1 // pred_check_branch
      %196 = sbr.rel (0) target = $region105
    $region104: #{tpu_custom_call.1} parent=1 // pred_region
      %197 = dma.done [#allocation18], 1024
    $region105: #{tpu_custom_call.1} parent=1 // pred_fallthru
      _
    %p199 = scmp.eq.s32.totalorder 0, 0
    // Predicated region
    $region106: #{tpu_custom_call.1} parent=1 // pred_check
      %p200 = pneg %p199
    $region107: #{tpu_custom_call.1} parent=1 // pred_check_branch
      %202 = sbr.rel (%p200) target = $region109
    $region108: #{tpu_custom_call.1} parent=1 // pred_region
      %v203 = vlaneseq
      %v204 = vand.u32 %v203, 127
      %vm205 = vcmp.lt.s32.totalorder %v204, 32
      %v206 = vsel %vm205, 1, 0
      %v207 = vcvt.s32.f32 %v206
      %v208 = vld [vmem:[%s13] sm:$0xff]
      %v209 = vld [vmem:[%s13 + $0x8] sm:$0xff]
      %v210 = vld [vmem:[%s13 + $0x10] sm:$0xff]
      %v211 = vmul.f32 %v208, %v207
      %v212 = vmul.f32 %v209, %v207
      %v213 = vmul.f32 %v210, %v207
      %214 = vst [vmem:[#allocation21] sm:$0xff] %v211
      %215 = vst [vmem:[#allocation21 + $0x8] sm:$0xff] %v212
      %216 = vst [vmem:[#allocation21 + $0x10] sm:$0xff] %v213
      %v217 = vld [vmem:[%s14] sm:$0xff]
      %v218 = vld [vmem:[%s14 + $0x8] sm:$0xff]
      %v219 = vld [vmem:[%s14 + $0x10] sm:$0xff]
      %v220 = vmul.f32 %v217, %v207
      %v221 = vmul.f32 %v218, %v207
      %v222 = vmul.f32 %v219, %v207
      %223 = vst [vmem:[#allocation23] sm:$0xff] %v220
      %224 = vst [vmem:[#allocation23 + $0x8] sm:$0xff] %v221
      %225 = vst [vmem:[#allocation23 + $0x10] sm:$0xff] %v222
    $region109: #{tpu_custom_call.1} parent=1 // pred_fallthru
      _
    %s226 = smul.u32 0, 8
    %s227 = scalar_lea.vmem %s0, %s226
    %v228 = vld [vmem:[%s227] sm:$0xff]
    %v229 = vlaneseq
    %v230 = vand.u32 %v229, 127
    %231 = vset.pattern.permute.xlu0 0
    %232 = vperm.xlu0 %231, %v228
    %v233 = vpop.permute.xlu0 %232
    %vm234 = vcmp.eq.s32.totalorder %v230, %v233
    %v235 = vsel %vm234, 1, 0
    %v236 = vcvt.s32.f32 %v235
    %v237 = vpack.c.bf16 %v236, %v236
    %v238 = vld [vmem:[#allocation2] sm:$0xf]
    %v239 = vld [vmem:[#allocation2 + $0x4] sm:$0xf]
    %v242 = vunpack.c.l.b16 %v238
    %v243 = vunpack.c.l.b16 %v239
    %v244 = vpack.c.b16 %v243, %v242
    %vm246 = vcmask 130048
    %v248 = vsel %vm246, %v237, 0
    %250 = vmatprep.subr.bf16.mxu0 0
    %251 = vmatpush1.bf16.msra.mxu0 %v244
    %252 = vmatprep.subr.bf16.mxu0 0
    %253 = vmatpush1.bf16.msra.mxu0 0
    %254 = vmatprep.subr.bf16.mxu0 0
    %255 = vmatpush1.bf16.msra.mxu0 0
    %256 = vmatprep.subr.bf16.mxu0 0
    %257 = vmatpush1.bf16.msra.mxu0 0
    %258 = vmatprep.subr.bf16.mxu0 0
    %259 = vmatpush1.bf16.msra.mxu0 0
    %260 = vmatprep.subr.bf16.mxu0 0
    %261 = vmatpush1.bf16.msra.mxu0 0
    %262 = vmatprep.subr.bf16.mxu0 0
    %263 = vmatpush1.bf16.msra.mxu0 0
    %264 = vmatprep.subr.bf16.mxu0 0
    %265 = vmatpush1.bf16.msra.mxu0 0
    %266 = vmatprep.subr.bf16.mxu0 0
    %267 = vmatpush1.bf16.msra.mxu0 0
    %268 = vmatprep.subr.bf16.mxu0 0
    %269 = vmatpush1.bf16.msra.mxu0 0
    %270 = vmatprep.subr.bf16.mxu0 0
    %271 = vmatpush1.bf16.msra.mxu0 0
    %272 = vmatprep.subr.bf16.mxu0 0
    %273 = vmatpush1.bf16.msra.mxu0 0
    %274 = vmatprep.subr.bf16.mxu0 0
    %275 = vmatpush1.bf16.msra.mxu0 0
    %276 = vmatprep.subr.bf16.mxu0 0
    %277 = vmatpush1.bf16.msra.mxu0 0
    %278 = vmatprep.subr.bf16.mxu0 0
    %279 = vmatpush1.bf16.msra.mxu0 0
    %280 = vmatprep.subr.bf16.mxu0 0
    %281 = vmatpush1.bf16.msra.mxu0 0
    %282 = vmatprep.mubr.bf16.mxu0 0
    %283 = vmatmul.mubr.bf16.gmra.mrb[0].mxu0 %v248
    %v284 = vpop.f32.mrb[0].mxu0
    %v285 = vadd.f32 0.0, %v284
    %v286 = vpop.f32.mrb[0].mxu0
    %v287 = vpop.f32.mrb[0].mxu0
    %v288 = vpop.f32.mrb[0].mxu0
    %289 = vdwg.mxu0
    %v290 = vld [vmem:[#allocation21] sm:$0xff]
    %v291 = vld [vmem:[#allocation23] sm:$0xff]
    %v292 = vpack.c.bf16 %v285, %v285
    %v293 = vld [vmem:[#allocation5] sm:$0xff]
    %v294 = vld [vmem:[#allocation5 + $0x8] sm:$0xff]
    %v295 = vld [vmem:[#allocation5 + $0x10] sm:$0xff]
    %v296 = vld [vmem:[#allocation5 + $0x18] sm:$0xff]
    %v297 = vld [vmem:[#allocation5 + $0x20] sm:$0xff]
    %v298 = vld [vmem:[#allocation5 + $0x28] sm:$0xff]
    %v299 = vld [vmem:[#allocation5 + $0x30] sm:$0xff]
    %v300 = vld [vmem:[#allocation5 + $0x38] sm:$0xff]
    %v301 = vld [vmem:[#allocation5 + $0x40] sm:$0xff]
    %v302 = vld [vmem:[#allocation5 + $0x48] sm:$0xff]
    %v303 = vld [vmem:[#allocation5 + $0x50] sm:$0xff]
    %v304 = vld [vmem:[#allocation5 + $0x58] sm:$0xff]
    %v305 = vld [vmem:[#allocation5 + $0x60] sm:$0xff]
    %v306 = vld [vmem:[#allocation5 + $0x68] sm:$0xff]
    %v307 = vld [vmem:[#allocation5 + $0x70] sm:$0xff]
    %v308 = vld [vmem:[#allocation5 + $0x78] sm:$0xff]
    %v309 = vld [vmem:[#allocation5 + $0x80] sm:$0xff]
    %v310 = vld [vmem:[#allocation5 + $0x88] sm:$0xff]
    %v311 = vld [vmem:[#allocation5 + $0x90] sm:$0xff]
    %v312 = vld [vmem:[#allocation5 + $0x98] sm:$0xff]
    %v313 = vld [vmem:[#allocation5 + $0xa0] sm:$0xff]
    %v314 = vld [vmem:[#allocation5 + $0xa8] sm:$0xff]
    %v315 = vld [vmem:[#allocation5 + $0xb0] sm:$0xff]
    %v316 = vld [vmem:[#allocation5 + $0xb8] sm:$0xff]
    %v317 = vld [vmem:[#allocation5 + $0xc0] sm:$0xff]
    %v318 = vld [vmem:[#allocation5 + $0xc8] sm:$0xff]
    %v319 = vld [vmem:[#allocation5 + $0xd0] sm:$0xff]
    %v320 = vld [vmem:[#allocation5 + $0xd8] sm:$0xff]
    %v321 = vld [vmem:[#allocation5 + $0xe0] sm:$0xff]
    %v322 = vld [vmem:[#allocation5 + $0xe8] sm:$0xff]
    %v323 = vld [vmem:[#allocation5 + $0xf0] sm:$0xff]
    %v324 = vld [vmem:[#allocation5 + $0xf8] sm:$0xff]
    %v325 = vpack.c.bf16 %v290, %v290
    %v326 = vld [vmem:[#allocation7] sm:$0xff]
    %v327 = vld [vmem:[#allocation7 + $0x8] sm:$0xff]
    %v328 = vld [vmem:[#allocation7 + $0x10] sm:$0xff]
    %v329 = vld [vmem:[#allocation7 + $0x18] sm:$0xff]
    %v330 = vld [vmem:[#allocation7 + $0x20] sm:$0xff]
    %v331 = vld [vmem:[#allocation7 + $0x28] sm:$0xff]
    %v332 = vld [vmem:[#allocation7 + $0x30] sm:$0xff]
    %v333 = vld [vmem:[#allocation7 + $0x38] sm:$0xff]
    %v334 = vld [vmem:[#allocation7 + $0x40] sm:$0xff]
    %v335 = vld [vmem:[#allocation7 + $0x48] sm:$0xff]
    %v336 = vld [vmem:[#allocation7 + $0x50] sm:$0xff]
    %v337 = vld [vmem:[#allocation7 + $0x58] sm:$0xff]
    %v338 = vld [vmem:[#allocation7 + $0x60] sm:$0xff]
    %v339 = vld [vmem:[#allocation7 + $0x68] sm:$0xff]
    %v340 = vld [vmem:[#allocation7 + $0x70] sm:$0xff]
    %v341 = vld [vmem:[#allocation7 + $0x78] sm:$0xff]
    %v342 = vld [vmem:[#allocation7 + $0x80] sm:$0xff]
    %v343 = vld [vmem:[#allocation7 + $0x88] sm:$0xff]
    %v344 = vld [vmem:[#allocation7 + $0x90] sm:$0xff]
    %v345 = vld [vmem:[#allocation7 + $0x98] sm:$0xff]
    %v346 = vld [vmem:[#allocation7 + $0xa0] sm:$0xff]
    %v347 = vld [vmem:[#allocation7 + $0xa8] sm:$0xff]
    %v348 = vld [vmem:[#allocation7 + $0xb0] sm:$0xff]
    %v349 = vld [vmem:[#allocation7 + $0xb8] sm:$0xff]
    %v350 = vld [vmem:[#allocation7 + $0xc0] sm:$0xff]
    %v351 = vld [vmem:[#allocation7 + $0xc8] sm:$0xff]
    %v352 = vld [vmem:[#allocation7 + $0xd0] sm:$0xff]
    %v353 = vld [vmem:[#allocation7 + $0xd8] sm:$0xff]
    %v354 = vld [vmem:[#allocation7 + $0xe0] sm:$0xff]
    %v355 = vld [vmem:[#allocation7 + $0xe8] sm:$0xff]
    %v356 = vld [vmem:[#allocation7 + $0xf0] sm:$0xff]
    %v357 = vld [vmem:[#allocation7 + $0xf8] sm:$0xff]
    %v390 = vunpack.c.l.b16 %v326
    %v391 = vunpack.c.h.b16 %v326
    %v392 = vunpack.c.l.b16 %v327
    %v393 = vunpack.c.h.b16 %v327
    %v394 = vunpack.c.l.b16 %v328
    %v395 = vunpack.c.h.b16 %v328
    %v396 = vunpack.c.l.b16 %v329
    %v397 = vunpack.c.h.b16 %v329
    %v398 = vunpack.c.l.b16 %v330
    %v399 = vunpack.c.h.b16 %v330
    %v400 = vunpack.c.l.b16 %v331
    %v401 = vunpack.c.h.b16 %v331
    %v402 = vunpack.c.l.b16 %v332
    %v403 = vunpack.c.h.b16 %v332
    %v404 = vunpack.c.l.b16 %v333
    %v405 = vunpack.c.h.b16 %v333
    %v406 = vunpack.c.l.b16 %v334
    %v407 = vunpack.c.h.b16 %v334
    %v408 = vunpack.c.l.b16 %v335
    %v409 = vunpack.c.h.b16 %v335
    %v410 = vunpack.c.l.b16 %v336
    %v411 = vunpack.c.h.b16 %v336
    %v412 = vunpack.c.l.b16 %v337
    %v413 = vunpack.c.h.b16 %v337
    %v414 = vunpack.c.l.b16 %v338
    %v415 = vunpack.c.h.b16 %v338
    %v416 = vunpack.c.l.b16 %v339
    %v417 = vunpack.c.h.b16 %v339
    %v418 = vunpack.c.l.b16 %v340
    %v419 = vunpack.c.h.b16 %v340
    %v420 = vunpack.c.l.b16 %v341
    %v421 = vunpack.c.h.b16 %v341
    %v422 = vunpack.c.l.b16 %v342
    %v423 = vunpack.c.h.b16 %v342
    %v424 = vunpack.c.l.b16 %v343
    %v425 = vunpack.c.h.b16 %v343
    %v426 = vunpack.c.l.b16 %v344
    %v427 = vunpack.c.h.b16 %v344
    %v428 = vunpack.c.l.b16 %v345
    %v429 = vunpack.c.h.b16 %v345
    %v430 = vunpack.c.l.b16 %v346
    %v431 = vunpack.c.h.b16 %v346
    %v432 = vunpack.c.l.b16 %v347
    %v433 = vunpack.c.h.b16 %v347
    %v434 = vunpack.c.l.b16 %v348
    %v435 = vunpack.c.h.b16 %v348
    %v436 = vunpack.c.l.b16 %v349
    %v437 = vunpack.c.h.b16 %v349
    %v438 = vunpack.c.l.b16 %v350
    %v439 = vunpack.c.h.b16 %v350
    %v440 = vunpack.c.l.b16 %v351
    %v441 = vunpack.c.h.b16 %v351
    %v442 = vunpack.c.l.b16 %v352
    %v443 = vunpack.c.h.b16 %v352
    %v444 = vunpack.c.l.b16 %v353
    %v445 = vunpack.c.h.b16 %v353
    %v446 = vunpack.c.l.b16 %v354
    %v447 = vunpack.c.h.b16 %v354
    %v448 = vunpack.c.l.b16 %v355
    %v449 = vunpack.c.h.b16 %v355
    %v450 = vunpack.c.l.b16 %v356
    %v451 = vunpack.c.h.b16 %v356
    %v452 = vunpack.c.l.b16 %v357
    %v453 = vunpack.c.h.b16 %v357
    %v454 = vpack.c.b16 %v394, %v390
    %v455 = vpack.c.b16 %v395, %v391
    %v456 = vpack.c.b16 %v396, %v392
    %v457 = vpack.c.b16 %v397, %v393
    %v458 = vpack.c.b16 %v402, %v398
    %v459 = vpack.c.b16 %v403, %v399
    %v460 = vpack.c.b16 %v404, %v400
    %v461 = vpack.c.b16 %v405, %v401
    %v462 = vpack.c.b16 %v410, %v406
    %v463 = vpack.c.b16 %v411, %v407
    %v464 = vpack.c.b16 %v412, %v408
    %v465 = vpack.c.b16 %v413, %v409
    %v466 = vpack.c.b16 %v418, %v414
    %v467 = vpack.c.b16 %v419, %v415
    %v468 = vpack.c.b16 %v420, %v416
    %v469 = vpack.c.b16 %v421, %v417
    %v470 = vpack.c.b16 %v426, %v422
    %v471 = vpack.c.b16 %v427, %v423
    %v472 = vpack.c.b16 %v428, %v424
    %v473 = vpack.c.b16 %v429, %v425
    %v474 = vpack.c.b16 %v434, %v430
    %v475 = vpack.c.b16 %v435, %v431
    %v476 = vpack.c.b16 %v436, %v432
    %v477 = vpack.c.b16 %v437, %v433
    %v478 = vpack.c.b16 %v442, %v438
    %v479 = vpack.c.b16 %v443, %v439
    %v480 = vpack.c.b16 %v444, %v440
    %v481 = vpack.c.b16 %v445, %v441
    %v482 = vpack.c.b16 %v450, %v446
    %v483 = vpack.c.b16 %v451, %v447
    %v484 = vpack.c.b16 %v452, %v448
    %v485 = vpack.c.b16 %v453, %v449
    %518 = vmatprep.subr.bf16.mxu0 %v455
    %519 = vmatpush1.bf16.msra.mxu0 %v454
    %520 = vmatprep.subr.bf16.mxu0 %v459
    %521 = vmatpush1.bf16.msra.mxu0 %v458
    %522 = vmatprep.subr.bf16.mxu0 %v463
    %523 = vmatpush1.bf16.msra.mxu0 %v462
    %524 = vmatprep.subr.bf16.mxu0 %v467
    %525 = vmatpush1.bf16.msra.mxu0 %v466
    %526 = vmatprep.subr.bf16.mxu0 %v471
    %527 = vmatpush1.bf16.msra.mxu0 %v470
    %528 = vmatprep.subr.bf16.mxu0 %v475
    %529 = vmatpush1.bf16.msra.mxu0 %v474
    %530 = vmatprep.subr.bf16.mxu0 %v479
    %531 = vmatpush1.bf16.msra.mxu0 %v478
    %532 = vmatprep.subr.bf16.mxu0 %v483
    %533 = vmatpush1.bf16.msra.mxu0 %v482
    %534 = vmatprep.subr.bf16.mxu0 0
    %535 = vmatpush1.bf16.msra.mxu0 0
    %536 = vmatprep.subr.bf16.mxu0 0
    %537 = vmatpush1.bf16.msra.mxu0 0
    %538 = vmatprep.subr.bf16.mxu0 0
    %539 = vmatpush1.bf16.msra.mxu0 0
    %540 = vmatprep.subr.bf16.mxu0 0
    %541 = vmatpush1.bf16.msra.mxu0 0
    %542 = vmatprep.subr.bf16.mxu0 0
    %543 = vmatpush1.bf16.msra.mxu0 0
    %544 = vmatprep.subr.bf16.mxu0 0
    %545 = vmatpush1.bf16.msra.mxu0 0
    %546 = vmatprep.subr.bf16.mxu0 0
    %547 = vmatpush1.bf16.msra.mxu0 0
    %548 = vmatprep.subr.bf16.mxu0 0
    %549 = vmatpush1.bf16.msra.mxu0 0
    %550 = vmatprep.mubr.bf16.mxu0 0
    %551 = vmatmul.mubr.bf16.gmra.mrb[0].mxu0 %v325
    %v552 = vpop.f32.mrb[0].mxu0
    %v553 = vadd.f32 0.0, %v552
    %v554 = vpop.f32.mrb[0].mxu0
    %v555 = vadd.f32 0.0, %v554
    %v556 = vpop.f32.mrb[0].mxu0
    %v557 = vpop.f32.mrb[0].mxu0
    %558 = vdwg.mxu0
    %559 = vmatprep.subr.bf16.mxu0 %v457
    %560 = vmatpush1.bf16.msra.mxu0 %v456
    %561 = vmatprep.subr.bf16.mxu0 %v461
    %562 = vmatpush1.bf16.msra.mxu0 %v460
    %563 = vmatprep.subr.bf16.mxu0 %v465
    %564 = vmatpush1.bf16.msra.mxu0 %v464
    %565 = vmatprep.subr.bf16.mxu0 %v469
    %566 = vmatpush1.bf16.msra.mxu0 %v468
    %567 = vmatprep.subr.bf16.mxu0 %v473
    %568 = vmatpush1.bf16.msra.mxu0 %v472
    %569 = vmatprep.subr.bf16.mxu0 %v477
    %570 = vmatpush1.bf16.msra.mxu0 %v476
    %571 = vmatprep.subr.bf16.mxu0 %v481
    %572 = vmatpush1.bf16.msra.mxu0 %v480
    %573 = vmatprep.subr.bf16.mxu0 %v485
    %574 = vmatpush1.bf16.msra.mxu0 %v484
    %575 = vmatprep.subr.bf16.mxu0 0
    %576 = vmatpush1.bf16.msra.mxu0 0
    %577 = vmatprep.subr.bf16.mxu0 0
    %578 = vmatpush1.bf16.msra.mxu0 0
    %579 = vmatprep.subr.bf16.mxu0 0
    %580 = vmatpush1.bf16.msra.mxu0 0
    %581 = vmatprep.subr.bf16.mxu0 0
    %582 = vmatpush1.bf16.msra.mxu0 0
    %583 = vmatprep.subr.bf16.mxu0 0
    %584 = vmatpush1.bf16.msra.mxu0 0
    %585 = vmatprep.subr.bf16.mxu0 0
    %586 = vmatpush1.bf16.msra.mxu0 0
    %587 = vmatprep.subr.bf16.mxu0 0
    %588 = vmatpush1.bf16.msra.mxu0 0
    %589 = vmatprep.subr.bf16.mxu0 0
    %590 = vmatpush1.bf16.msra.mxu0 0
    %591 = vmatprep.mubr.bf16.mxu0 0
    %592 = vmatmul.mubr.bf16.gmra.mrb[0].mxu0 %v325
    %v593 = vpop.f32.mrb[0].mxu0
    %v594 = vadd.f32 0.0, %v593
    %v595 = vpop.f32.mrb[0].mxu0
    %v596 = vadd.f32 0.0, %v595
    %v597 = vpop.f32.mrb[0].mxu0
    %v598 = vpop.f32.mrb[0].mxu0
    %599 = vdwg.mxu0
    %v632 = vunpack.c.l.b16 %v293
    %v633 = vunpack.c.h.b16 %v293
    %v634 = vunpack.c.l.b16 %v294
    %v635 = vunpack.c.h.b16 %v294
    %v636 = vunpack.c.l.b16 %v295
    %v637 = vunpack.c.h.b16 %v295
    %v638 = vunpack.c.l.b16 %v296
    %v639 = vunpack.c.h.b16 %v296
    %v640 = vunpack.c.l.b16 %v297
    %v641 = vunpack.c.h.b16 %v297
    %v642 = vunpack.c.l.b16 %v298
    %v643 = vunpack.c.h.b16 %v298
    %v644 = vunpack.c.l.b16 %v299
    %v645 = vunpack.c.h.b16 %v299
    %v646 = vunpack.c.l.b16 %v300
    %v647 = vunpack.c.h.b16 %v300
    %v648 = vunpack.c.l.b16 %v301
    %v649 = vunpack.c.h.b16 %v301
    %v650 = vunpack.c.l.b16 %v302
    %v651 = vunpack.c.h.b16 %v302
    %v652 = vunpack.c.l.b16 %v303
    %v653 = vunpack.c.h.b16 %v303
    %v654 = vunpack.c.l.b16 %v304
    %v655 = vunpack.c.h.b16 %v304
    %v656 = vunpack.c.l.b16 %v305
    %v657 = vunpack.c.h.b16 %v305
    %v658 = vunpack.c.l.b16 %v306
    %v659 = vunpack.c.h.b16 %v306
    %v660 = vunpack.c.l.b16 %v307
    %v661 = vunpack.c.h.b16 %v307
    %v662 = vunpack.c.l.b16 %v308
    %v663 = vunpack.c.h.b16 %v308
    %v664 = vunpack.c.l.b16 %v309
    %v665 = vunpack.c.h.b16 %v309
    %v666 = vunpack.c.l.b16 %v310
    %v667 = vunpack.c.h.b16 %v310
    %v668 = vunpack.c.l.b16 %v311
    %v669 = vunpack.c.h.b16 %v311
    %v670 = vunpack.c.l.b16 %v312
    %v671 = vunpack.c.h.b16 %v312
    %v672 = vunpack.c.l.b16 %v313
    %v673 = vunpack.c.h.b16 %v313
    %v674 = vunpack.c.l.b16 %v314
    %v675 = vunpack.c.h.b16 %v314
    %v676 = vunpack.c.l.b16 %v315
    %v677 = vunpack.c.h.b16 %v315
    %v678 = vunpack.c.l.b16 %v316
    %v679 = vunpack.c.h.b16 %v316
    %v680 = vunpack.c.l.b16 %v317
    %v681 = vunpack.c.h.b16 %v317
    %v682 = vunpack.c.l.b16 %v318
    %v683 = vunpack.c.h.b16 %v318
    %v684 = vunpack.c.l.b16 %v319
    %v685 = vunpack.c.h.b16 %v319
    %v686 = vunpack.c.l.b16 %v320
    %v687 = vunpack.c.h.b16 %v320
    %v688 = vunpack.c.l.b16 %v321
    %v689 = vunpack.c.h.b16 %v321
    %v690 = vunpack.c.l.b16 %v322
    %v691 = vunpack.c.h.b16 %v322
    %v692 = vunpack.c.l.b16 %v323
    %v693 = vunpack.c.h.b16 %v323
    %v694 = vunpack.c.l.b16 %v324
    %v695 = vunpack.c.h.b16 %v324
    %v696 = vpack.c.b16 %v636, %v632
    %v697 = vpack.c.b16 %v637, %v633
    %v698 = vpack.c.b16 %v638, %v634
    %v699 = vpack.c.b16 %v639, %v635
    %v700 = vpack.c.b16 %v644, %v640
    %v701 = vpack.c.b16 %v645, %v641
    %v702 = vpack.c.b16 %v646, %v642
    %v703 = vpack.c.b16 %v647, %v643
    %v704 = vpack.c.b16 %v652, %v648
    %v705 = vpack.c.b16 %v653, %v649
    %v706 = vpack.c.b16 %v654, %v650
    %v707 = vpack.c.b16 %v655, %v651
    %v708 = vpack.c.b16 %v660, %v656
    %v709 = vpack.c.b16 %v661, %v657
    %v710 = vpack.c.b16 %v662, %v658
    %v711 = vpack.c.b16 %v663, %v659
    %v712 = vpack.c.b16 %v668, %v664
    %v713 = vpack.c.b16 %v669, %v665
    %v714 = vpack.c.b16 %v670, %v666
    %v715 = vpack.c.b16 %v671, %v667
    %v716 = vpack.c.b16 %v676, %v672
    %v717 = vpack.c.b16 %v677, %v673
    %v718 = vpack.c.b16 %v678, %v674
    %v719 = vpack.c.b16 %v679, %v675
    %v720 = vpack.c.b16 %v684, %v680
    %v721 = vpack.c.b16 %v685, %v681
    %v722 = vpack.c.b16 %v686, %v682
    %v723 = vpack.c.b16 %v687, %v683
    %v724 = vpack.c.b16 %v692, %v688
    %v725 = vpack.c.b16 %v693, %v689
    %v726 = vpack.c.b16 %v694, %v690
    %v727 = vpack.c.b16 %v695, %v691
    %760 = vmatprep.subr.bf16.mxu0 %v697
    %761 = vmatpush1.bf16.msra.mxu0 %v696
    %762 = vmatprep.subr.bf16.mxu0 %v701
    %763 = vmatpush1.bf16.msra.mxu0 %v700
    %764 = vmatprep.subr.bf16.mxu0 %v705
    %765 = vmatpush1.bf16.msra.mxu0 %v704
    %766 = vmatprep.subr.bf16.mxu0 %v709
    %767 = vmatpush1.bf16.msra.mxu0 %v708
    %768 = vmatprep.subr.bf16.mxu0 %v713
    %769 = vmatpush1.bf16.msra.mxu0 %v712
    %770 = vmatprep.subr.bf16.mxu0 %v717
    %771 = vmatpush1.bf16.msra.mxu0 %v716
    %772 = vmatprep.subr.bf16.mxu0 %v721
    %773 = vmatpush1.bf16.msra.mxu0 %v720
    %774 = vmatprep.subr.bf16.mxu0 %v725
    %775 = vmatpush1.bf16.msra.mxu0 %v724
    %776 = vmatprep.subr.bf16.mxu0 0
    %777 = vmatpush1.bf16.msra.mxu0 0
    %778 = vmatprep.subr.bf16.mxu0 0
    %779 = vmatpush1.bf16.msra.mxu0 0
    %780 = vmatprep.subr.bf16.mxu0 0
    %781 = vmatpush1.bf16.msra.mxu0 0
    %782 = vmatprep.subr.bf16.mxu0 0
    %783 = vmatpush1.bf16.msra.mxu0 0
    %784 = vmatprep.subr.bf16.mxu0 0
    %785 = vmatpush1.bf16.msra.mxu0 0
    %786 = vmatprep.subr.bf16.mxu0 0
    %787 = vmatpush1.bf16.msra.mxu0 0
    %788 = vmatprep.subr.bf16.mxu0 0
    %789 = vmatpush1.bf16.msra.mxu0 0
    %790 = vmatprep.subr.bf16.mxu0 0
    %791 = vmatpush1.bf16.msra.mxu0 0
    %792 = vmatprep.mubr.bf16.mxu0 0
    %793 = vmatmul.mubr.bf16.gmra.mrb[0].mxu0 %v292
    %v794 = vpop.f32.mrb[0].mxu0
    %v795 = vadd.f32 %v553, %v794
    %v796 = vpop.f32.mrb[0].mxu0
    %v797 = vadd.f32 %v555, %v796
    %v798 = vpop.f32.mrb[0].mxu0
    %v799 = vpop.f32.mrb[0].mxu0
    %800 = vdwg.mxu0
    %801 = vmatprep.subr.bf16.mxu0 %v699
    %802 = vmatpush1.bf16.msra.mxu0 %v698
    %803 = vmatprep.subr.bf16.mxu0 %v703
    %804 = vmatpush1.bf16.msra.mxu0 %v702
    %805 = vmatprep.subr.bf16.mxu0 %v707
    %806 = vmatpush1.bf16.msra.mxu0 %v706
    %807 = vmatprep.subr.bf16.mxu0 %v711
    %808 = vmatpush1.bf16.msra.mxu0 %v710
    %809 = vmatprep.subr.bf16.mxu0 %v715
    %810 = vmatpush1.bf16.msra.mxu0 %v714
    %811 = vmatprep.subr.bf16.mxu0 %v719
    %812 = vmatpush1.bf16.msra.mxu0 %v718
    %813 = vmatprep.subr.bf16.mxu0 %v723
    %814 = vmatpush1.bf16.msra.mxu0 %v722
    %815 = vmatprep.subr.bf16.mxu0 %v727
    %816 = vmatpush1.bf16.msra.mxu0 %v726
    %817 = vmatprep.subr.bf16.mxu0 0
    %818 = vmatpush1.bf16.msra.mxu0 0
    %819 = vmatprep.subr.bf16.mxu0 0
    %820 = vmatpush1.bf16.msra.mxu0 0
    %821 = vmatprep.subr.bf16.mxu0 0
    %822 = vmatpush1.bf16.msra.mxu0 0
    %823 = vmatprep.subr.bf16.mxu0 0
    %824 = vmatpush1.bf16.msra.mxu0 0
    %825 = vmatprep.subr.bf16.mxu0 0
    %826 = vmatpush1.bf16.msra.mxu0 0
    %827 = vmatprep.subr.bf16.mxu0 0
    %828 = vmatpush1.bf16.msra.mxu0 0
    %829 = vmatprep.subr.bf16.mxu0 0
    %830 = vmatpush1.bf16.msra.mxu0 0
    %831 = vmatprep.subr.bf16.mxu0 0
    %832 = vmatpush1.bf16.msra.mxu0 0
    %833 = vmatprep.mubr.bf16.mxu0 0
    %834 = vmatmul.mubr.bf16.gmra.mrb[0].mxu0 %v292
    %v835 = vpop.f32.mrb[0].mxu0
    %v836 = vadd.f32 %v594, %v835
    %v837 = vpop.f32.mrb[0].mxu0
    %v838 = vadd.f32 %v596, %v837
    %v839 = vpop.f32.mrb[0].mxu0
    %v840 = vpop.f32.mrb[0].mxu0
    %841 = vdwg.mxu0
    %v842 = vld [vmem:[#allocation8] sm:$0xf]
    %v844 = vlaneseq
    %v845 = vshrl.u32 %v844, 7
    %v846 = vsub.s32 0, %v845
    %v847 = vrot.slane %v842, %v846
    %v848 = vlaneseq
    %v849 = vshrl.u32 %v848, 7
    %v850 = vsub.s32 1, %v849
    %v851 = vrot.slane %v842, %v850
    %v852 = vlaneseq
    %v853 = vshrl.u32 %v852, 7
    %v854 = vsub.s32 2, %v853
    %v855 = vrot.slane %v842, %v854
    %v856 = vlaneseq
    %v857 = vshrl.u32 %v856, 7
    %v858 = vsub.s32 3, %v857
    %v859 = vrot.slane %v842, %v858
    %v864 = vadd.f32 %v795, %v847
    %v865 = vadd.f32 %v797, %v851
    %v866 = vadd.f32 %v836, %v855
    %v867 = vadd.f32 %v838, %v859
    %v868 = vxor.u32 %v864, 2147483648
    %v869 = vmul.f32 %v868, 1.442695
    %v870 = vpow.pop %v869
    %v871 = vadd.f32 %v870, 1.0
    %v872 = vrcp.pop %v871
    %v873 = vmul.f32 1.0, %v872
    %v874 = vxor.u32 %v865, 2147483648
    %v875 = vmul.f32 %v874, 1.442695
    %v876 = vpow.pop %v875
    %v877 = vadd.f32 %v876, 1.0
    %v878 = vrcp.pop %v877
    %v879 = vmul.f32 1.0, %v878
    %v880 = vtanh.pop %v866
    %v881 = vxor.u32 %v867, 2147483648
    %v882 = vmul.f32 %v881, 1.442695
    %v883 = vpow.pop %v882
    %v884 = vadd.f32 %v883, 1.0
    %v885 = vrcp.pop %v884
    %v886 = vmul.f32 1.0, %v885
    %v887 = vmul.f32 %v879, %v291
    %v888 = vmul.f32 %v873, %v880
    %v889 = vadd.f32 %v887, %v888
    %v890 = vtanh.pop %v889
    %v891 = vmul.f32 %v886, %v890
    %892 = vst [vmem:[#allocation21] sm:$0xff] %v891
    %893 = vst [vmem:[#allocation23] sm:$0xff] %v889
    %s894 = scalar_lea.vmem [#allocation21], 8
    %v895 = vld [vmem:[%s894] sm:$0xff]
    %s896 = scalar_lea.vmem [#allocation23], 8
    %v897 = vld [vmem:[%s896] sm:$0xff]
    %v898 = vpack.c.bf16 %v891, %v891
    %v899 = vld [vmem:[#allocation10] sm:$0xff]
    %v900 = vld [vmem:[#allocation10 + $0x8] sm:$0xff]
    %v901 = vld [vmem:[#allocation10 + $0x10] sm:$0xff]
    %v902 = vld [vmem:[#allocation10 + $0x18] sm:$0xff]
    %v903 = vld [vmem:[#allocation10 + $0x20] sm:$0xff]
    %v904 = vld [vmem:[#allocation10 + $0x28] sm:$0xff]
    %v905 = vld [vmem:[#allocation10 + $0x30] sm:$0xff]
    %v906 = vld [vmem:[#allocation10 + $0x38] sm:$0xff]
    %v907 = vld [vmem:[#allocation10 + $0x40] sm:$0xff]
    %v908 = vld [vmem:[#allocation10 + $0x48] sm:$0xff]
    %v909 = vld [vmem:[#allocation10 + $0x50] sm:$0xff]
    %v910 = vld [vmem:[#allocation10 + $0x58] sm:$0xff]
    %v911 = vld [vmem:[#allocation10 + $0x60] sm:$0xff]
    %v912 = vld [vmem:[#allocation10 + $0x68] sm:$0xff]
    %v913 = vld [vmem:[#allocation10 + $0x70] sm:$0xff]
    %v914 = vld [vmem:[#allocation10 + $0x78] sm:$0xff]
    %v915 = vld [vmem:[#allocation10 + $0x80] sm:$0xff]
    %v916 = vld [vmem:[#allocation10 + $0x88] sm:$0xff]
    %v917 = vld [vmem:[#allocation10 + $0x90] sm:$0xff]
    %v918 = vld [vmem:[#allocation10 + $0x98] sm:$0xff]
    %v919 = vld [vmem:[#allocation10 + $0xa0] sm:$0xff]
    %v920 = vld [vmem:[#allocation10 + $0xa8] sm:$0xff]
    %v921 = vld [vmem:[#allocation10 + $0xb0] sm:$0xff]
    %v922 = vld [vmem:[#allocation10 + $0xb8] sm:$0xff]
    %v923 = vld [vmem:[#allocation10 + $0xc0] sm:$0xff]
    %v924 = vld [vmem:[#allocation10 + $0xc8] sm:$0xff]
    %v925 = vld [vmem:[#allocation10 + $0xd0] sm:$0xff]
    %v926 = vld [vmem:[#allocation10 + $0xd8] sm:$0xff]
    %v927 = vld [vmem:[#allocation10 + $0xe0] sm:$0xff]
    %v928 = vld [vmem:[#allocation10 + $0xe8] sm:$0xff]
    %v929 = vld [vmem:[#allocation10 + $0xf0] sm:$0xff]
    %v930 = vld [vmem:[#allocation10 + $0xf8] sm:$0xff]
    %v931 = vpack.c.bf16 %v895, %v895
    %v932 = vld [vmem:[#allocation11] sm:$0xff]
    %v933 = vld [vmem:[#allocation11 + $0x8] sm:$0xff]
    %v934 = vld [vmem:[#allocation11 + $0x10] sm:$0xff]
    %v935 = vld [vmem:[#allocation11 + $0x18] sm:$0xff]
    %v936 = vld [vmem:[#allocation11 + $0x20] sm:$0xff]
    %v937 = vld [vmem:[#allocation11 + $0x28] sm:$0xff]
    %v938 = vld [vmem:[#allocation11 + $0x30] sm:$0xff]
    %v939 = vld [vmem:[#allocation11 + $0x38] sm:$0xff]
    %v940 = vld [vmem:[#allocation11 + $0x40] sm:$0xff]
    %v941 = vld [vmem:[#allocation11 + $0x48] sm:$0xff]
    %v942 = vld [vmem:[#allocation11 + $0x50] sm:$0xff]
    %v943 = vld [vmem:[#allocation11 + $0x58] sm:$0xff]
    %v944 = vld [vmem:[#allocation11 + $0x60] sm:$0xff]
    %v945 = vld [vmem:[#allocation11 + $0x68] sm:$0xff]
    %v946 = vld [vmem:[#allocation11 + $0x70] sm:$0xff]
    %v947 = vld [vmem:[#allocation11 + $0x78] sm:$0xff]
    %v948 = vld [vmem:[#allocation11 + $0x80] sm:$0xff]
    %v949 = vld [vmem:[#allocation11 + $0x88] sm:$0xff]
    %v950 = vld [vmem:[#allocation11 + $0x90] sm:$0xff]
    %v951 = vld [vmem:[#allocation11 + $0x98] sm:$0xff]
    %v952 = vld [vmem:[#allocation11 + $0xa0] sm:$0xff]
    %v953 = vld [vmem:[#allocation11 + $0xa8] sm:$0xff]
    %v954 = vld [vmem:[#allocation11 + $0xb0] sm:$0xff]
    %v955 = vld [vmem:[#allocation11 + $0xb8] sm:$0xff]
    %v956 = vld [vmem:[#allocation11 + $0xc0] sm:$0xff]
    %v957 = vld [vmem:[#allocation11 + $0xc8] sm:$0xff]
    %v958 = vld [vmem:[#allocation11 + $0xd0] sm:$0xff]
    %v959 = vld [vmem:[#allocation11 + $0xd8] sm:$0xff]
    %v960 = vld [vmem:[#allocation11 + $0xe0] sm:$0xff]
    %v961 = vld [vmem:[#allocation11 + $0xe8] sm:$0xff]
    %v962 = vld [vmem:[#allocation11 + $0xf0] sm:$0xff]
    %v963 = vld [vmem:[#allocation11 + $0xf8] sm:$0xff]
    %v996 = vunpack.c.l.b16 %v932
    %v997 = vunpack.c.h.b16 %v932
    %v998 = vunpack.c.l.b16 %v933
    %v999 = vunpack.c.h.b16 %v933
    %v1000 = vunpack.c.l.b16 %v934
    %v1001 = vunpack.c.h.b16 %v934
    %v1002 = vunpack.c.l.b16 %v935
    %v1003 = vunpack.c.h.b16 %v935
    %v1004 = vunpack.c.l.b16 %v936
    %v1005 = vunpack.c.h.b16 %v936
    %v1006 = vunpack.c.l.b16 %v937
    %v1007 = vunpack.c.h.b16 %v937
    %v1008 = vunpack.c.l.b16 %v938
    %v1009 = vunpack.c.h.b16 %v938
    %v1010 = vunpack.c.l.b16 %v939
    %v1011 = vunpack.c.h.b16 %v939
    %v1012 = vunpack.c.l.b16 %v940
    %v1013 = vunpack.c.h.b16 %v940
    %v1014 = vunpack.c.l.b16 %v941
    %v1015 = vunpack.c.h.b16 %v941
    %v1016 = vunpack.c.l.b16 %v942
    %v1017 = vunpack.c.h.b16 %v942
    %v1018 = vunpack.c.l.b16 %v943
    %v1019 = vunpack.c.h.b16 %v943
    %v1020 = vunpack.c.l.b16 %v944
    %v1021 = vunpack.c.h.b16 %v944
    %v1022 = vunpack.c.l.b16 %v945
    %v1023 = vunpack.c.h.b16 %v945
    %v1024 = vunpack.c.l.b16 %v946
    %v1025 = vunpack.c.h.b16 %v946
    %v1026 = vunpack.c.l.b16 %v947
    %v1027 = vunpack.c.h.b16 %v947
    %v1028 = vunpack.c.l.b16 %v948
    %v1029 = vunpack.c.h.b16 %v948
    %v1030 = vunpack.c.l.b16 %v949
    %v1031 = vunpack.c.h.b16 %v949
    %v1032 = vunpack.c.l.b16 %v950
    %v1033 = vunpack.c.h.b16 %v950
    %v1034 = vunpack.c.l.b16 %v951
    %v1035 = vunpack.c.h.b16 %v951
    %v1036 = vunpack.c.l.b16 %v952
    %v1037 = vunpack.c.h.b16 %v952
    %v1038 = vunpack.c.l.b16 %v953
    %v1039 = vunpack.c.h.b16 %v953
    %v1040 = vunpack.c.l.b16 %v954
    %v1041 = vunpack.c.h.b16 %v954
    %v1042 = vunpack.c.l.b16 %v955
    %v1043 = vunpack.c.h.b16 %v955
    %v1044 = vunpack.c.l.b16 %v956
    %v1045 = vunpack.c.h.b16 %v956
    %v1046 = vunpack.c.l.b16 %v957
    %v1047 = vunpack.c.h.b16 %v957
    %v1048 = vunpack.c.l.b16 %v958
    %v1049 = vunpack.c.h.b16 %v958
    %v1050 = vunpack.c.l.b16 %v959
    %v1051 = vunpack.c.h.b16 %v959
    %v1052 = vunpack.c.l.b16 %v960
    %v1053 = vunpack.c.h.b16 %v960
    %v1054 = vunpack.c.l.b16 %v961
    %v1055 = vunpack.c.h.b16 %v961
    %v1056 = vunpack.c.l.b16 %v962
    %v1057 = vunpack.c.h.b16 %v962
    %v1058 = vunpack.c.l.b16 %v963
    %v1059 = vunpack.c.h.b16 %v963
    %v1060 = vpack.c.b16 %v1000, %v996
    %v1061 = vpack.c.b16 %v1001, %v997
    %v1062 = vpack.c.b16 %v1002, %v998
    %v1063 = vpack.c.b16 %v1003, %v999
    %v1064 = vpack.c.b16 %v1008, %v1004
    %v1065 = vpack.c.b16 %v1009, %v1005
    %v1066 = vpack.c.b16 %v1010, %v1006
    %v1067 = vpack.c.b16 %v1011, %v1007
    %v1068 = vpack.c.b16 %v1016, %v1012
    %v1069 = vpack.c.b16 %v1017, %v1013
    %v1070 = vpack.c.b16 %v1018, %v1014
    %v1071 = vpack.c.b16 %v1019, %v1015
    %v1072 = vpack.c.b16 %v1024, %v1020
    %v1073 = vpack.c.b16 %v1025, %v1021
    %v1074 = vpack.c.b16 %v1026, %v1022
    %v1075 = vpack.c.b16 %v1027, %v1023
    %v1076 = vpack.c.b16 %v1032, %v1028
    %v1077 = vpack.c.b16 %v1033, %v1029
    %v1078 = vpack.c.b16 %v1034, %v1030
    %v1079 = vpack.c.b16 %v1035, %v1031
    %v1080 = vpack.c.b16 %v1040, %v1036
    %v1081 = vpack.c.b16 %v1041, %v1037
    %v1082 = vpack.c.b16 %v1042, %v1038
    %v1083 = vpack.c.b16 %v1043, %v1039
    %v1084 = vpack.c.b16 %v1048, %v1044
    %v1085 = vpack.c.b16 %v1049, %v1045
    %v1086 = vpack.c.b16 %v1050, %v1046
    %v1087 = vpack.c.b16 %v1051, %v1047
    %v1088 = vpack.c.b16 %v1056, %v1052
    %v1089 = vpack.c.b16 %v1057, %v1053
    %v1090 = vpack.c.b16 %v1058, %v1054
    %v1091 = vpack.c.b16 %v1059, %v1055
    %1124 = vmatprep.subr.bf16.mxu0 %v1061
    %1125 = vmatpush1.bf16.msra.mxu0 %v1060
    %1126 = vmatprep.subr.bf16.mxu0 %v1065
    %1127 = vmatpush1.bf16.msra.mxu0 %v1064
    %1128 = vmatprep.subr.bf16.mxu0 %v1069
    %1129 = vmatpush1.bf16.msra.mxu0 %v1068
    %1130 = vmatprep.subr.bf16.mxu0 %v1073
    %1131 = vmatpush1.bf16.msra.mxu0 %v1072
    %1132 = vmatprep.subr.bf16.mxu0 %v1077
    %1133 = vmatpush1.bf16.msra.mxu0 %v1076
    %1134 = vmatprep.subr.bf16.mxu0 %v1081
    %1135 = vmatpush1.bf16.msra.mxu0 %v1080
    %1136 = vmatprep.subr.bf16.mxu0 %v1085
    %1137 = vmatpush1.bf16.msra.mxu0 %v1084
    %1138 = vmatprep.subr.bf16.mxu0 %v1089
    %1139 = vmatpush1.bf16.msra.mxu0 %v1088
    %1140 = vmatprep.subr.bf16.mxu0 0
    %1141 = vmatpush1.bf16.msra.mxu0 0
    %1142 = vmatprep.subr.bf16.mxu0 0
    %1143 = vmatpush1.bf16.msra.mxu0 0
    %1144 = vmatprep.subr.bf16.mxu0 0
    %1145 = vmatpush1.bf16.msra.mxu0 0
    %1146 = vmatprep.subr.bf16.mxu0 0
    %1147 = vmatpush1.bf16.msra.mxu0 0
    %1148 = vmatprep.subr.bf16.mxu0 0
    %1149 = vmatpush1.bf16.msra.mxu0 0
    %1150 = vmatprep.subr.bf16.mxu0 0
    %1151 = vmatpush1.bf16.msra.mxu0 0
    %1152 = vmatprep.subr.bf16.mxu0 0
    %1153 = vmatpush1.bf16.msra.mxu0 0
    %1154 = vmatprep.subr.bf16.mxu0 0
    %1155 = vmatpush1.bf16.msra.mxu0 0
    %1156 = vmatprep.mubr.bf16.mxu0 0
    %1157 = vmatmul.mubr.bf16.gmra.mrb[0].mxu0 %v931
    %v1158 = vpop.f32.mrb[0].mxu0
    %v1159 = vadd.f32 0.0, %v1158
    %v1160 = vpop.f32.mrb[0].mxu0
    %v1161 = vadd.f32 0.0, %v1160
    %v1162 = vpop.f32.mrb[0].mxu0
    %v1163 = vpop.f32.mrb[0].mxu0
    %1164 = vdwg.mxu0
    %1165 = vmatprep.subr.bf16.mxu0 %v1063
    %1166 = vmatpush1.bf16.msra.mxu0 %v1062
    %1167 = vmatprep.subr.bf16.mxu0 %v1067
    %1168 = vmatpush1.bf16.msra.mxu0 %v1066
    %1169 = vmatprep.subr.bf16.mxu0 %v1071
    %1170 = vmatpush1.bf16.msra.mxu0 %v1070
    %1171 = vmatprep.subr.bf16.mxu0 %v1075
    %1172 = vmatpush1.bf16.msra.mxu0 %v1074
    %1173 = vmatprep.subr.bf16.mxu0 %v1079
    %1174 = vmatpush1.bf16.msra.mxu0 %v1078
    %1175 = vmatprep.subr.bf16.mxu0 %v1083
    %1176 = vmatpush1.bf16.msra.mxu0 %v1082
    %1177 = vmatprep.subr.bf16.mxu0 %v1087
    %1178 = vmatpush1.bf16.msra.mxu0 %v1086
    %1179 = vmatprep.subr.bf16.mxu0 %v1091
    %1180 = vmatpush1.bf16.msra.mxu0 %v1090
    %1181 = vmatprep.subr.bf16.mxu0 0
    %1182 = vmatpush1.bf16.msra.mxu0 0
    %1183 = vmatprep.subr.bf16.mxu0 0
    %1184 = vmatpush1.bf16.msra.mxu0 0
    %1185 = vmatprep.subr.bf16.mxu0 0
    %1186 = vmatpush1.bf16.msra.mxu0 0
    %1187 = vmatprep.subr.bf16.mxu0 0
    %1188 = vmatpush1.bf16.msra.mxu0 0
    %1189 = vmatprep.subr.bf16.mxu0 0
    %1190 = vmatpush1.bf16.msra.mxu0 0
    %1191 = vmatprep.subr.bf16.mxu0 0
    %1192 = vmatpush1.bf16.msra.mxu0 0
    %1193 = vmatprep.subr.bf16.mxu0 0
    %1194 = vmatpush1.bf16.msra.mxu0 0
    %1195 = vmatprep.subr.bf16.mxu0 0
    %1196 = vmatpush1.bf16.msra.mxu0 0
    %1197 = vmatprep.mubr.bf16.mxu0 0
    %1198 = vmatmul.mubr.bf16.gmra.mrb[0].mxu0 %v931
    %v1199 = vpop.f32.mrb[0].mxu0
    %v1200 = vadd.f32 0.0, %v1199
    %v1201 = vpop.f32.mrb[0].mxu0
    %v1202 = vadd.f32 0.0, %v1201
    %v1203 = vpop.f32.mrb[0].mxu0
    %v1204 = vpop.f32.mrb[0].mxu0
    %1205 = vdwg.mxu0
    %v1238 = vunpack.c.l.b16 %v899
    %v1239 = vunpack.c.h.b16 %v899
    %v1240 = vunpack.c.l.b16 %v900
    %v1241 = vunpack.c.h.b16 %v900
    %v1242 = vunpack.c.l.b16 %v901
    %v1243 = vunpack.c.h.b16 %v901
    %v1244 = vunpack.c.l.b16 %v902
    %v1245 = vunpack.c.h.b16 %v902
    %v1246 = vunpack.c.l.b16 %v903
    %v1247 = vunpack.c.h.b16 %v903
    %v1248 = vunpack.c.l.b16 %v904
    %v1249 = vunpack.c.h.b16 %v904
    %v1250 = vunpack.c.l.b16 %v905
    %v1251 = vunpack.c.h.b16 %v905
    %v1252 = vunpack.c.l.b16 %v906
    %v1253 = vunpack.c.h.b16 %v906
    %v1254 = vunpack.c.l.b16 %v907
    %v1255 = vunpack.c.h.b16 %v907
    %v1256 = vunpack.c.l.b16 %v908
    %v1257 = vunpack.c.h.b16 %v908
    %v1258 = vunpack.c.l.b16 %v909
    %v1259 = vunpack.c.h.b16 %v909
    %v1260 = vunpack.c.l.b16 %v910
    %v1261 = vunpack.c.h.b16 %v910
    %v1262 = vunpack.c.l.b16 %v911
    %v1263 = vunpack.c.h.b16 %v911
    %v1264 = vunpack.c.l.b16 %v912
    %v1265 = vunpack.c.h.b16 %v912
    %v1266 = vunpack.c.l.b16 %v913
    %v1267 = vunpack.c.h.b16 %v913
    %v1268 = vunpack.c.l.b16 %v914
    %v1269 = vunpack.c.h.b16 %v914
    %v1270 = vunpack.c.l.b16 %v915
    %v1271 = vunpack.c.h.b16 %v915
    %v1272 = vunpack.c.l.b16 %v916
    %v1273 = vunpack.c.h.b16 %v916
    %v1274 = vunpack.c.l.b16 %v917
    %v1275 = vunpack.c.h.b16 %v917
    %v1276 = vunpack.c.l.b16 %v918
    %v1277 = vunpack.c.h.b16 %v918
    %v1278 = vunpack.c.l.b16 %v919
    %v1279 = vunpack.c.h.b16 %v919
    %v1280 = vunpack.c.l.b16 %v920
    %v1281 = vunpack.c.h.b16 %v920
    %v1282 = vunpack.c.l.b16 %v921
    %v1283 = vunpack.c.h.b16 %v921
    %v1284 = vunpack.c.l.b16 %v922
    %v1285 = vunpack.c.h.b16 %v922
    %v1286 = vunpack.c.l.b16 %v923
    %v1287 = vunpack.c.h.b16 %v923
    %v1288 = vunpack.c.l.b16 %v924
    %v1289 = vunpack.c.h.b16 %v924
    %v1290 = vunpack.c.l.b16 %v925
    %v1291 = vunpack.c.h.b16 %v925
    %v1292 = vunpack.c.l.b16 %v926
    %v1293 = vunpack.c.h.b16 %v926
    %v1294 = vunpack.c.l.b16 %v927
    %v1295 = vunpack.c.h.b16 %v927
    %v1296 = vunpack.c.l.b16 %v928
    %v1297 = vunpack.c.h.b16 %v928
    %v1298 = vunpack.c.l.b16 %v929
    %v1299 = vunpack.c.h.b16 %v929
    %v1300 = vunpack.c.l.b16 %v930
    %v1301 = vunpack.c.h.b16 %v930
    %v1302 = vpack.c.b16 %v1242, %v1238
    %v1303 = vpack.c.b16 %v1243, %v1239
    %v1304 = vpack.c.b16 %v1244, %v1240
    %v1305 = vpack.c.b16 %v1245, %v1241
    %v1306 = vpack.c.b16 %v1250, %v1246
    %v1307 = vpack.c.b16 %v1251, %v1247
    %v1308 = vpack.c.b16 %v1252, %v1248
    %v1309 = vpack.c.b16 %v1253, %v1249
    %v1310 = vpack.c.b16 %v1258, %v1254
    %v1311 = vpack.c.b16 %v1259, %v1255
    %v1312 = vpack.c.b16 %v1260, %v1256
    %v1313 = vpack.c.b16 %v1261, %v1257
    %v1314 = vpack.c.b16 %v1266, %v1262
    %v1315 = vpack.c.b16 %v1267, %v1263
    %v1316 = vpack.c.b16 %v1268, %v1264
    %v1317 = vpack.c.b16 %v1269, %v1265
    %v1318 = vpack.c.b16 %v1274, %v1270
    %v1319 = vpack.c.b16 %v1275, %v1271
    %v1320 = vpack.c.b16 %v1276, %v1272
    %v1321 = vpack.c.b16 %v1277, %v1273
    %v1322 = vpack.c.b16 %v1282, %v1278
    %v1323 = vpack.c.b16 %v1283, %v1279
    %v1324 = vpack.c.b16 %v1284, %v1280
    %v1325 = vpack.c.b16 %v1285, %v1281
    %v1326 = vpack.c.b16 %v1290, %v1286
    %v1327 = vpack.c.b16 %v1291, %v1287
    %v1328 = vpack.c.b16 %v1292, %v1288
    %v1329 = vpack.c.b16 %v1293, %v1289
    %v1330 = vpack.c.b16 %v1298, %v1294
    %v1331 = vpack.c.b16 %v1299, %v1295
    %v1332 = vpack.c.b16 %v1300, %v1296
    %v1333 = vpack.c.b16 %v1301, %v1297
    %1366 = vmatprep.subr.bf16.mxu0 %v1303
    %1367 = vmatpush1.bf16.msra.mxu0 %v1302
    %1368 = vmatprep.subr.bf16.mxu0 %v1307
    %1369 = vmatpush1.bf16.msra.mxu0 %v1306
    %1370 = vmatprep.subr.bf16.mxu0 %v1311
    %1371 = vmatpush1.bf16.msra.mxu0 %v1310
    %1372 = vmatprep.subr.bf16.mxu0 %v1315
    %1373 = vmatpush1.bf16.msra.mxu0 %v1314
    %1374 = vmatprep.subr.bf16.mxu0 %v1319
    %1375 = vmatpush1.bf16.msra.mxu0 %v1318
    %1376 = vmatprep.subr.bf16.mxu0 %v1323
    %1377 = vmatpush1.bf16.msra.mxu0 %v1322
    %1378 = vmatprep.subr.bf16.mxu0 %v1327
    %1379 = vmatpush1.bf16.msra.mxu0 %v1326
    %1380 = vmatprep.subr.bf16.mxu0 %v1331
    %1381 = vmatpush1.bf16.msra.mxu0 %v1330
    %1382 = vmatprep.subr.bf16.mxu0 0
    %1383 = vmatpush1.bf16.msra.mxu0 0
    %1384 = vmatprep.subr.bf16.mxu0 0
    %1385 = vmatpush1.bf16.msra.mxu0 0
    %1386 = vmatprep.subr.bf16.mxu0 0
    %1387 = vmatpush1.bf16.msra.mxu0 0
    %1388 = vmatprep.subr.bf16.mxu0 0
    %1389 = vmatpush1.bf16.msra.mxu0 0
    %1390 = vmatprep.subr.bf16.mxu0 0
    %1391 = vmatpush1.bf16.msra.mxu0 0
    %1392 = vmatprep.subr.bf16.mxu0 0
    %1393 = vmatpush1.bf16.msra.mxu0 0
    %1394 = vmatprep.subr.bf16.mxu0 0
    %1395 = vmatpush1.bf16.msra.mxu0 0
    %1396 = vmatprep.subr.bf16.mxu0 0
    %1397 = vmatpush1.bf16.msra.mxu0 0
    %1398 = vmatprep.mubr.bf16.mxu0 0
    %1399 = vmatmul.mubr.bf16.gmra.mrb[0].mxu0 %v898
    %v1400 = vpop.f32.mrb[0].mxu0
    %v1401 = vadd.f32 %v1159, %v1400
    %v1402 = vpop.f32.mrb[0].mxu0
    %v1403 = vadd.f32 %v1161, %v1402
    %v1404 = vpop.f32.mrb[0].mxu0
    %v1405 = vpop.f32.mrb[0].mxu0
    %1406 = vdwg.mxu0
    %1407 = vmatprep.subr.bf16.mxu0 %v1305
    %1408 = vmatpush1.bf16.msra.mxu0 %v1304
    %1409 = vmatprep.subr.bf16.mxu0 %v1309
    %1410 = vmatpush1.bf16.msra.mxu0 %v1308
    %1411 = vmatprep.subr.bf16.mxu0 %v1313
    %1412 = vmatpush1.bf16.msra.mxu0 %v1312
    %1413 = vmatprep.subr.bf16.mxu0 %v1317
    %1414 = vmatpush1.bf16.msra.mxu0 %v1316
    %1415 = vmatprep.subr.bf16.mxu0 %v1321
    %1416 = vmatpush1.bf16.msra.mxu0 %v1320
    %1417 = vmatprep.subr.bf16.mxu0 %v1325
    %1418 = vmatpush1.bf16.msra.mxu0 %v1324
    %1419 = vmatprep.subr.bf16.mxu0 %v1329
    %1420 = vmatpush1.bf16.msra.mxu0 %v1328
    %1421 = vmatprep.subr.bf16.mxu0 %v1333
    %1422 = vmatpush1.bf16.msra.mxu0 %v1332
    %1423 = vmatprep.subr.bf16.mxu0 0
    %1424 = vmatpush1.bf16.msra.mxu0 0
    %1425 = vmatprep.subr.bf16.mxu0 0
    %1426 = vmatpush1.bf16.msra.mxu0 0
    %1427 = vmatprep.subr.bf16.mxu0 0
    %1428 = vmatpush1.bf16.msra.mxu0 0
    %1429 = vmatprep.subr.bf16.mxu0 0
    %1430 = vmatpush1.bf16.msra.mxu0 0
    %1431 = vmatprep.subr.bf16.mxu0 0
    %1432 = vmatpush1.bf16.msra.mxu0 0
    %1433 = vmatprep.subr.bf16.mxu0 0
    %1434 = vmatpush1.bf16.msra.mxu0 0
    %1435 = vmatprep.subr.bf16.mxu0 0
    %1436 = vmatpush1.bf16.msra.mxu0 0
    %1437 = vmatprep.subr.bf16.mxu0 0
    %1438 = vmatpush1.bf16.msra.mxu0 0
    %1439 = vmatprep.mubr.bf16.mxu0 0
    %1440 = vmatmul.mubr.bf16.gmra.mrb[0].mxu0 %v898
    %v1441 = vpop.f32.mrb[0].mxu0
    %v1442 = vadd.f32 %v1200, %v1441
    %v1443 = vpop.f32.mrb[0].mxu0
    %v1444 = vadd.f32 %v1202, %v1443
    %v1445 = vpop.f32.mrb[0].mxu0
    %v1446 = vpop.f32.mrb[0].mxu0
    %1447 = vdwg.mxu0
    %v1448 = vld [vmem:[#allocation13] sm:$0xf]
    %v1450 = vlaneseq
    %v1451 = vshrl.u32 %v1450, 7
    %v1452 = vsub.s32 0, %v1451
    %v1453 = vrot.slane %v1448, %v1452
    %v1454 = vlaneseq
    %v1455 = vshrl.u32 %v1454, 7
    %v1456 = vsub.s32 1, %v1455
    %v1457 = vrot.slane %v1448, %v1456
    %v1458 = vlaneseq
    %v1459 = vshrl.u32 %v1458, 7
    %v1460 = vsub.s32 2, %v1459
    %v1461 = vrot.slane %v1448, %v1460
    %v1462 = vlaneseq
    %v1463 = vshrl.u32 %v1462, 7
    %v1464 = vsub.s32 3, %v1463
    %v1465 = vrot.slane %v1448, %v1464
    %v1470 = vadd.f32 %v1401, %v1453
    %v1471 = vadd.f32 %v1403, %v1457
    %v1472 = vadd.f32 %v1442, %v1461
    %v1473 = vadd.f32 %v1444, %v1465
    %v1474 = vxor.u32 %v1470, 2147483648
    %v1475 = vmul.f32 %v1474, 1.442695
    %v1476 = vpow.pop %v1475
    %v1477 = vadd.f32 %v1476, 1.0
    %v1478 = vrcp.pop %v1477
    %v1479 = vmul.f32 1.0, %v1478
    %v1480 = vxor.u32 %v1471, 2147483648
    %v1481 = vmul.f32 %v1480, 1.442695
    %v1482 = vpow.pop %v1481
    %v1483 = vadd.f32 %v1482, 1.0
    %v1484 = vrcp.pop %v1483
    %v1485 = vmul.f32 1.0, %v1484
    %v1486 = vtanh.pop %v1472
    %v1487 = vxor.u32 %v1473, 2147483648
    %v1488 = vmul.f32 %v1487, 1.442695
    %v1489 = vpow.pop %v1488
    %v1490 = vadd.f32 %v1489, 1.0
    %v1491 = vrcp.pop %v1490
    %v1492 = vmul.f32 1.0, %v1491
    %v1493 = vmul.f32 %v1485, %v897
    %v1494 = vmul.f32 %v1479, %v1486
    %v1495 = vadd.f32 %v1493, %v1494
    %v1496 = vtanh.pop %v1495
    %v1497 = vmul.f32 %v1492, %v1496
    %1498 = vst [vmem:[%s894] sm:$0xff] %v1497
    %1499 = vst [vmem:[%s896] sm:$0xff] %v1495
    %s1500 = scalar_lea.vmem [#allocation21], 16
    %v1501 = vld [vmem:[%s1500] sm:$0xff]
    %s1502 = scalar_lea.vmem [#allocation23], 16
    %v1503 = vld [vmem:[%s1502] sm:$0xff]
    %v1504 = vpack.c.bf16 %v1497, %v1497
    %v1505 = vld [vmem:[#allocation14] sm:$0xff]
    %v1506 = vld [vmem:[#allocation14 + $0x8] sm:$0xff]
    %v1507 = vld [vmem:[#allocation14 + $0x10] sm:$0xff]
    %v1508 = vld [vmem:[#allocation14 + $0x18] sm:$0xff]
    %v1509 = vld [vmem:[#allocation14 + $0x20] sm:$0xff]
    %v1510 = vld [vmem:[#allocation14 + $0x28] sm:$0xff]
    %v1511 = vld [vmem:[#allocation14 + $0x30] sm:$0xff]
    %v1512 = vld [vmem:[#allocation14 + $0x38] sm:$0xff]
    %v1513 = vld [vmem:[#allocation14 + $0x40] sm:$0xff]
    %v1514 = vld [vmem:[#allocation14 + $0x48] sm:$0xff]
    %v1515 = vld [vmem:[#allocation14 + $0x50] sm:$0xff]
    %v1516 = vld [vmem:[#allocation14 + $0x58] sm:$0xff]
    %v1517 = vld [vmem:[#allocation14 + $0x60] sm:$0xff]
    %v1518 = vld [vmem:[#allocation14 + $0x68] sm:$0xff]
    %v1519 = vld [vmem:[#allocation14 + $0x70] sm:$0xff]
    %v1520 = vld [vmem:[#allocation14 + $0x78] sm:$0xff]
    %v1521 = vld [vmem:[#allocation14 + $0x80] sm:$0xff]
    %v1522 = vld [vmem:[#allocation14 + $0x88] sm:$0xff]
    %v1523 = vld [vmem:[#allocation14 + $0x90] sm:$0xff]
    %v1524 = vld [vmem:[#allocation14 + $0x98] sm:$0xff]
    %v1525 = vld [vmem:[#allocation14 + $0xa0] sm:$0xff]
    %v1526 = vld [vmem:[#allocation14 + $0xa8] sm:$0xff]
    %v1527 = vld [vmem:[#allocation14 + $0xb0] sm:$0xff]
    %v1528 = vld [vmem:[#allocation14 + $0xb8] sm:$0xff]
    %v1529 = vld [vmem:[#allocation14 + $0xc0] sm:$0xff]
    %v1530 = vld [vmem:[#allocation14 + $0xc8] sm:$0xff]
    %v1531 = vld [vmem:[#allocation14 + $0xd0] sm:$0xff]
    %v1532 = vld [vmem:[#allocation14 + $0xd8] sm:$0xff]
    %v1533 = vld [vmem:[#allocation14 + $0xe0] sm:$0xff]
    %v1534 = vld [vmem:[#allocation14 + $0xe8] sm:$0xff]
    %v1535 = vld [vmem:[#allocation14 + $0xf0] sm:$0xff]
    %v1536 = vld [vmem:[#allocation14 + $0xf8] sm:$0xff]
    %v1537 = vpack.c.bf16 %v1501, %v1501
    %v1538 = vld [vmem:[#allocation16] sm:$0xff]
    %v1539 = vld [vmem:[#allocation16 + $0x8] sm:$0xff]
    %v1540 = vld [vmem:[#allocation16 + $0x10] sm:$0xff]
    %v1541 = vld [vmem:[#allocation16 + $0x18] sm:$0xff]
    %v1542 = vld [vmem:[#allocation16 + $0x20] sm:$0xff]
    %v1543 = vld [vmem:[#allocation16 + $0x28] sm:$0xff]
    %v1544 = vld [vmem:[#allocation16 + $0x30] sm:$0xff]
    %v1545 = vld [vmem:[#allocation16 + $0x38] sm:$0xff]
    %v1546 = vld [vmem:[#allocation16 + $0x40] sm:$0xff]
    %v1547 = vld [vmem:[#allocation16 + $0x48] sm:$0xff]
    %v1548 = vld [vmem:[#allocation16 + $0x50] sm:$0xff]
    %v1549 = vld [vmem:[#allocation16 + $0x58] sm:$0xff]
    %v1550 = vld [vmem:[#allocation16 + $0x60] sm:$0xff]
    %v1551 = vld [vmem:[#allocation16 + $0x68] sm:$0xff]
    %v1552 = vld [vmem:[#allocation16 + $0x70] sm:$0xff]
    %v1553 = vld [vmem:[#allocation16 + $0x78] sm:$0xff]
    %v1554 = vld [vmem:[#allocation16 + $0x80] sm:$0xff]
    %v1555 = vld [vmem:[#allocation16 + $0x88] sm:$0xff]
    %v1556 = vld [vmem:[#allocation16 + $0x90] sm:$0xff]
    %v1557 = vld [vmem:[#allocation16 + $0x98] sm:$0xff]
    %v1558 = vld [vmem:[#allocation16 + $0xa0] sm:$0xff]
    %v1559 = vld [vmem:[#allocation16 + $0xa8] sm:$0xff]
    %v1560 = vld [vmem:[#allocation16 + $0xb0] sm:$0xff]
    %v1561 = vld [vmem:[#allocation16 + $0xb8] sm:$0xff]
    %v1562 = vld [vmem:[#allocation16 + $0xc0] sm:$0xff]
    %v1563 = vld [vmem:[#allocation16 + $0xc8] sm:$0xff]
    %v1564 = vld [vmem:[#allocation16 + $0xd0] sm:$0xff]
    %v1565 = vld [vmem:[#allocation16 + $0xd8] sm:$0xff]
    %v1566 = vld [vmem:[#allocation16 + $0xe0] sm:$0xff]
    %v1567 = vld [vmem:[#allocation16 + $0xe8] sm:$0xff]
    %v1568 = vld [vmem:[#allocation16 + $0xf0] sm:$0xff]
    %v1569 = vld [vmem:[#allocation16 + $0xf8] sm:$0xff]
    %v1602 = vunpack.c.l.b16 %v1538
    %v1603 = vunpack.c.h.b16 %v1538
    %v1604 = vunpack.c.l.b16 %v1539
    %v1605 = vunpack.c.h.b16 %v1539
    %v1606 = vunpack.c.l.b16 %v1540
    %v1607 = vunpack.c.h.b16 %v1540
    %v1608 = vunpack.c.l.b16 %v1541
    %v1609 = vunpack.c.h.b16 %v1541
    %v1610 = vunpack.c.l.b16 %v1542
    %v1611 = vunpack.c.h.b16 %v1542
    %v1612 = vunpack.c.l.b16 %v1543
    %v1613 = vunpack.c.h.b16 %v1543
    %v1614 = vunpack.c.l.b16 %v1544
    %v1615 = vunpack.c.h.b16 %v1544
    %v1616 = vunpack.c.l.b16 %v1545
    %v1617 = vunpack.c.h.b16 %v1545
    %v1618 = vunpack.c.l.b16 %v1546
    %v1619 = vunpack.c.h.b16 %v1546
    %v1620 = vunpack.c.l.b16 %v1547
    %v1621 = vunpack.c.h.b16 %v1547
    %v1622 = vunpack.c.l.b16 %v1548
    %v1623 = vunpack.c.h.b16 %v1548
    %v1624 = vunpack.c.l.b16 %v1549
    %v1625 = vunpack.c.h.b16 %v1549
    %v1626 = vunpack.c.l.b16 %v1550
    %v1627 = vunpack.c.h.b16 %v1550
    %v1628 = vunpack.c.l.b16 %v1551
    %v1629 = vunpack.c.h.b16 %v1551
    %v1630 = vunpack.c.l.b16 %v1552
    %v1631 = vunpack.c.h.b16 %v1552
    %v1632 = vunpack.c.l.b16 %v1553
    %v1633 = vunpack.c.h.b16 %v1553
    %v1634 = vunpack.c.l.b16 %v1554
    %v1635 = vunpack.c.h.b16 %v1554
    %v1636 = vunpack.c.l.b16 %v1555
    %v1637 = vunpack.c.h.b16 %v1555
    %v1638 = vunpack.c.l.b16 %v1556
    %v1639 = vunpack.c.h.b16 %v1556
    %v1640 = vunpack.c.l.b16 %v1557
    %v1641 = vunpack.c.h.b16 %v1557
    %v1642 = vunpack.c.l.b16 %v1558
    %v1643 = vunpack.c.h.b16 %v1558
    %v1644 = vunpack.c.l.b16 %v1559
    %v1645 = vunpack.c.h.b16 %v1559
    %v1646 = vunpack.c.l.b16 %v1560
    %v1647 = vunpack.c.h.b16 %v1560
    %v1648 = vunpack.c.l.b16 %v1561
    %v1649 = vunpack.c.h.b16 %v1561
    %v1650 = vunpack.c.l.b16 %v1562
    %v1651 = vunpack.c.h.b16 %v1562
    %v1652 = vunpack.c.l.b16 %v1563
    %v1653 = vunpack.c.h.b16 %v1563
    %v1654 = vunpack.c.l.b16 %v1564
    %v1655 = vunpack.c.h.b16 %v1564
    %v1656 = vunpack.c.l.b16 %v1565
    %v1657 = vunpack.c.h.b16 %v1565
    %v1658 = vunpack.c.l.b16 %v1566
    %v1659 = vunpack.c.h.b16 %v1566
    %v1660 = vunpack.c.l.b16 %v1567
    %v1661 = vunpack.c.h.b16 %v1567
    %v1662 = vunpack.c.l.b16 %v1568
    %v1663 = vunpack.c.h.b16 %v1568
    %v1664 = vunpack.c.l.b16 %v1569
    %v1665 = vunpack.c.h.b16 %v1569
    %v1666 = vpack.c.b16 %v1606, %v1602
    %v1667 = vpack.c.b16 %v1607, %v1603
    %v1668 = vpack.c.b16 %v1608, %v1604
    %v1669 = vpack.c.b16 %v1609, %v1605
    %v1670 = vpack.c.b16 %v1614, %v1610
    %v1671 = vpack.c.b16 %v1615, %v1611
    %v1672 = vpack.c.b16 %v1616, %v1612
    %v1673 = vpack.c.b16 %v1617, %v1613
    %v1674 = vpack.c.b16 %v1622, %v1618
    %v1675 = vpack.c.b16 %v1623, %v1619
    %v1676 = vpack.c.b16 %v1624, %v1620
    %v1677 = vpack.c.b16 %v1625, %v1621
    %v1678 = vpack.c.b16 %v1630, %v1626
    %v1679 = vpack.c.b16 %v1631, %v1627
    %v1680 = vpack.c.b16 %v1632, %v1628
    %v1681 = vpack.c.b16 %v1633, %v1629
    %v1682 = vpack.c.b16 %v1638, %v1634
    %v1683 = vpack.c.b16 %v1639, %v1635
    %v1684 = vpack.c.b16 %v1640, %v1636
    %v1685 = vpack.c.b16 %v1641, %v1637
    %v1686 = vpack.c.b16 %v1646, %v1642
    %v1687 = vpack.c.b16 %v1647, %v1643
    %v1688 = vpack.c.b16 %v1648, %v1644
    %v1689 = vpack.c.b16 %v1649, %v1645
    %v1690 = vpack.c.b16 %v1654, %v1650
    %v1691 = vpack.c.b16 %v1655, %v1651
    %v1692 = vpack.c.b16 %v1656, %v1652
    %v1693 = vpack.c.b16 %v1657, %v1653
    %v1694 = vpack.c.b16 %v1662, %v1658
    %v1695 = vpack.c.b16 %v1663, %v1659
    %v1696 = vpack.c.b16 %v1664, %v1660
    %v1697 = vpack.c.b16 %v1665, %v1661
    %1730 = vmatprep.subr.bf16.mxu0 %v1667
    %1731 = vmatpush1.bf16.msra.mxu0 %v1666
    %1732 = vmatprep.subr.bf16.mxu0 %v1671
    %1733 = vmatpush1.bf16.msra.mxu0 %v1670
    %1734 = vmatprep.subr.bf16.mxu0 %v1675
    %1735 = vmatpush1.bf16.msra.mxu0 %v1674
    %1736 = vmatprep.subr.bf16.mxu0 %v1679
    %1737 = vmatpush1.bf16.msra.mxu0 %v1678
    %1738 = vmatprep.subr.bf16.mxu0 %v1683
    %1739 = vmatpush1.bf16.msra.mxu0 %v1682
    %1740 = vmatprep.subr.bf16.mxu0 %v1687
    %1741 = vmatpush1.bf16.msra.mxu0 %v1686
    %1742 = vmatprep.subr.bf16.mxu0 %v1691
    %1743 = vmatpush1.bf16.msra.mxu0 %v1690
    %1744 = vmatprep.subr.bf16.mxu0 %v1695
    %1745 = vmatpush1.bf16.msra.mxu0 %v1694
    %1746 = vmatprep.subr.bf16.mxu0 0
    %1747 = vmatpush1.bf16.msra.mxu0 0
    %1748 = vmatprep.subr.bf16.mxu0 0
    %1749 = vmatpush1.bf16.msra.mxu0 0
    %1750 = vmatprep.subr.bf16.mxu0 0
    %1751 = vmatpush1.bf16.msra.mxu0 0
    %1752 = vmatprep.subr.bf16.mxu0 0
    %1753 = vmatpush1.bf16.msra.mxu0 0
    %1754 = vmatprep.subr.bf16.mxu0 0
    %1755 = vmatpush1.bf16.msra.mxu0 0
    %1756 = vmatprep.subr.bf16.mxu0 0
    %1757 = vmatpush1.bf16.msra.mxu0 0
    %1758 = vmatprep.subr.bf16.mxu0 0
    %1759 = vmatpush1.bf16.msra.mxu0 0
    %1760 = vmatprep.subr.bf16.mxu0 0
    %1761 = vmatpush1.bf16.msra.mxu0 0
    %1762 = vmatprep.mubr.bf16.mxu0 0
    %1763 = vmatmul.mubr.bf16.gmra.mrb[0].mxu0 %v1537
    %v1764 = vpop.f32.mrb[0].mxu0
    %v1765 = vadd.f32 0.0, %v1764
    %v1766 = vpop.f32.mrb[0].mxu0
    %v1767 = vadd.f32 0.0, %v1766
    %v1768 = vpop.f32.mrb[0].mxu0
    %v1769 = vpop.f32.mrb[0].mxu0
    %1770 = vdwg.mxu0
    %1771 = vmatprep.subr.bf16.mxu0 %v1669
    %1772 = vmatpush1.bf16.msra.mxu0 %v1668
    %1773 = vmatprep.subr.bf16.mxu0 %v1673
    %1774 = vmatpush1.bf16.msra.mxu0 %v1672
    %1775 = vmatprep.subr.bf16.mxu0 %v1677
    %1776 = vmatpush1.bf16.msra.mxu0 %v1676
    %1777 = vmatprep.subr.bf16.mxu0 %v1681
    %1778 = vmatpush1.bf16.msra.mxu0 %v1680
    %1779 = vmatprep.subr.bf16.mxu0 %v1685
    %1780 = vmatpush1.bf16.msra.mxu0 %v1684
    %1781 = vmatprep.subr.bf16.mxu0 %v1689
    %1782 = vmatpush1.bf16.msra.mxu0 %v1688
    %1783 = vmatprep.subr.bf16.mxu0 %v1693
    %1784 = vmatpush1.bf16.msra.mxu0 %v1692
    %1785 = vmatprep.subr.bf16.mxu0 %v1697
    %1786 = vmatpush1.bf16.msra.mxu0 %v1696
    %1787 = vmatprep.subr.bf16.mxu0 0
    %1788 = vmatpush1.bf16.msra.mxu0 0
    %1789 = vmatprep.subr.bf16.mxu0 0
    %1790 = vmatpush1.bf16.msra.mxu0 0
    %1791 = vmatprep.subr.bf16.mxu0 0
    %1792 = vmatpush1.bf16.msra.mxu0 0
    %1793 = vmatprep.subr.bf16.mxu0 0
    %1794 = vmatpush1.bf16.msra.mxu0 0
    %1795 = vmatprep.subr.bf16.mxu0 0
    %1796 = vmatpush1.bf16.msra.mxu0 0
    %1797 = vmatprep.subr.bf16.mxu0 0
    %1798 = vmatpush1.bf16.msra.mxu0 0
    %1799 = vmatprep.subr.bf16.mxu0 0
    %1800 = vmatpush1.bf16.msra.mxu0 0
    %1801 = vmatprep.subr.bf16.mxu0 0
    %1802 = vmatpush1.bf16.msra.mxu0 0
    %1803 = vmatprep.mubr.bf16.mxu0 0
    %1804 = vmatmul.mubr.bf16.gmra.mrb[0].mxu0 %v1537
    %v1805 = vpop.f32.mrb[0].mxu0
    %v1806 = vadd.f32 0.0, %v1805
    %v1807 = vpop.f32.mrb[0].mxu0
    %v1808 = vadd.f32 0.0, %v1807
    %v1809 = vpop.f32.mrb[0].mxu0
    %v1810 = vpop.f32.mrb[0].mxu0
    %1811 = vdwg.mxu0
    %v1844 = vunpack.c.l.b16 %v1505
    %v1845 = vunpack.c.h.b16 %v1505
    %v1846 = vunpack.c.l.b16 %v1506
    %v1847 = vunpack.c.h.b16 %v1506
    %v1848 = vunpack.c.l.b16 %v1507
    %v1849 = vunpack.c.h.b16 %v1507
    %v1850 = vunpack.c.l.b16 %v1508
    %v1851 = vunpack.c.h.b16 %v1508
    %v1852 = vunpack.c.l.b16 %v1509
    %v1853 = vunpack.c.h.b16 %v1509
    %v1854 = vunpack.c.l.b16 %v1510
    %v1855 = vunpack.c.h.b16 %v1510
    %v1856 = vunpack.c.l.b16 %v1511
    %v1857 = vunpack.c.h.b16 %v1511
    %v1858 = vunpack.c.l.b16 %v1512
    %v1859 = vunpack.c.h.b16 %v1512
    %v1860 = vunpack.c.l.b16 %v1513
    %v1861 = vunpack.c.h.b16 %v1513
    %v1862 = vunpack.c.l.b16 %v1514
    %v1863 = vunpack.c.h.b16 %v1514
    %v1864 = vunpack.c.l.b16 %v1515
    %v1865 = vunpack.c.h.b16 %v1515
    %v1866 = vunpack.c.l.b16 %v1516
    %v1867 = vunpack.c.h.b16 %v1516
    %v1868 = vunpack.c.l.b16 %v1517
    %v1869 = vunpack.c.h.b16 %v1517
    %v1870 = vunpack.c.l.b16 %v1518
    %v1871 = vunpack.c.h.b16 %v1518
    %v1872 = vunpack.c.l.b16 %v1519
    %v1873 = vunpack.c.h.b16 %v1519
    %v1874 = vunpack.c.l.b16 %v1520
    %v1875 = vunpack.c.h.b16 %v1520
    %v1876 = vunpack.c.l.b16 %v1521
    %v1877 = vunpack.c.h.b16 %v1521
    %v1878 = vunpack.c.l.b16 %v1522
    %v1879 = vunpack.c.h.b16 %v1522
    %v1880 = vunpack.c.l.b16 %v1523
    %v1881 = vunpack.c.h.b16 %v1523
    %v1882 = vunpack.c.l.b16 %v1524
    %v1883 = vunpack.c.h.b16 %v1524
    %v1884 = vunpack.c.l.b16 %v1525
    %v1885 = vunpack.c.h.b16 %v1525
    %v1886 = vunpack.c.l.b16 %v1526
    %v1887 = vunpack.c.h.b16 %v1526
    %v1888 = vunpack.c.l.b16 %v1527
    %v1889 = vunpack.c.h.b16 %v1527
    %v1890 = vunpack.c.l.b16 %v1528
    %v1891 = vunpack.c.h.b16 %v1528
    %v1892 = vunpack.c.l.b16 %v1529
    %v1893 = vunpack.c.h.b16 %v1529
    %v1894 = vunpack.c.l.b16 %v1530
    %v1895 = vunpack.c.h.b16 %v1530
    %v1896 = vunpack.c.l.b16 %v1531
    %v1897 = vunpack.c.h.b16 %v1531
    %v1898 = vunpack.c.l.b16 %v1532
    %v1899 = vunpack.c.h.b16 %v1532
    %v1900 = vunpack.c.l.b16 %v1533
    %v1901 = vunpack.c.h.b16 %v1533
    %v1902 = vunpack.c.l.b16 %v1534
    %v1903 = vunpack.c.h.b16 %v1534
    %v1904 = vunpack.c.l.b16 %v1535
    %v1905 = vunpack.c.h.b16 %v1535
    %v1906 = vunpack.c.l.b16 %v1536
    %v1907 = vunpack.c.h.b16 %v1536
    %v1908 = vpack.c.b16 %v1848, %v1844
    %v1909 = vpack.c.b16 %v1849, %v1845
    %v1910 = vpack.c.b16 %v1850, %v1846
    %v1911 = vpack.c.b16 %v1851, %v1847
    %v1912 = vpack.c.b16 %v1856, %v1852
    %v1913 = vpack.c.b16 %v1857, %v1853
    %v1914 = vpack.c.b16 %v1858, %v1854
    %v1915 = vpack.c.b16 %v1859, %v1855
    %v1916 = vpack.c.b16 %v1864, %v1860
    %v1917 = vpack.c.b16 %v1865, %v1861
    %v1918 = vpack.c.b16 %v1866, %v1862
    %v1919 = vpack.c.b16 %v1867, %v1863
    %v1920 = vpack.c.b16 %v1872, %v1868
    %v1921 = vpack.c.b16 %v1873, %v1869
    %v1922 = vpack.c.b16 %v1874, %v1870
    %v1923 = vpack.c.b16 %v1875, %v1871
    %v1924 = vpack.c.b16 %v1880, %v1876
    %v1925 = vpack.c.b16 %v1881, %v1877
    %v1926 = vpack.c.b16 %v1882, %v1878
    %v1927 = vpack.c.b16 %v1883, %v1879
    %v1928 = vpack.c.b16 %v1888, %v1884
    %v1929 = vpack.c.b16 %v1889, %v1885
    %v1930 = vpack.c.b16 %v1890, %v1886
    %v1931 = vpack.c.b16 %v1891, %v1887
    %v1932 = vpack.c.b16 %v1896, %v1892
    %v1933 = vpack.c.b16 %v1897, %v1893
    %v1934 = vpack.c.b16 %v1898, %v1894
    %v1935 = vpack.c.b16 %v1899, %v1895
    %v1936 = vpack.c.b16 %v1904, %v1900
    %v1937 = vpack.c.b16 %v1905, %v1901
    %v1938 = vpack.c.b16 %v1906, %v1902
    %v1939 = vpack.c.b16 %v1907, %v1903
    %1972 = vmatprep.subr.bf16.mxu0 %v1909
    %1973 = vmatpush1.bf16.msra.mxu0 %v1908
    %1974 = vmatprep.subr.bf16.mxu0 %v1913
    %1975 = vmatpush1.bf16.msra.mxu0 %v1912
    %1976 = vmatprep.subr.bf16.mxu0 %v1917
    %1977 = vmatpush1.bf16.msra.mxu0 %v1916
    %1978 = vmatprep.subr.bf16.mxu0 %v1921
    %1979 = vmatpush1.bf16.msra.mxu0 %v1920
    %1980 = vmatprep.subr.bf16.mxu0 %v1925
    %1981 = vmatpush1.bf16.msra.mxu0 %v1924
    %1982 = vmatprep.subr.bf16.mxu0 %v1929
    %1983 = vmatpush1.bf16.msra.mxu0 %v1928
    %1984 = vmatprep.subr.bf16.mxu0 %v1933
    %1985 = vmatpush1.bf16.msra.mxu0 %v1932
    %1986 = vmatprep.subr.bf16.mxu0 %v1937
    %1987 = vmatpush1.bf16.msra.mxu0 %v1936
    %1988 = vmatprep.subr.bf16.mxu0 0
    %1989 = vmatpush1.bf16.msra.mxu0 0
    %1990 = vmatprep.subr.bf16.mxu0 0
    %1991 = vmatpush1.bf16.msra.mxu0 0
    %1992 = vmatprep.subr.bf16.mxu0 0
    %1993 = vmatpush1.bf16.msra.mxu0 0
    %1994 = vmatprep.subr.bf16.mxu0 0
    %1995 = vmatpush1.bf16.msra.mxu0 0
    %1996 = vmatprep.subr.bf16.mxu0 0
    %1997 = vmatpush1.bf16.msra.mxu0 0
    %1998 = vmatprep.subr.bf16.mxu0 0
    %1999 = vmatpush1.bf16.msra.mxu0 0
    %2000 = vmatprep.subr.bf16.mxu0 0
    %2001 = vmatpush1.bf16.msra.mxu0 0
    %2002 = vmatprep.subr.bf16.mxu0 0
    %2003 = vmatpush1.bf16.msra.mxu0 0
    %2004 = vmatprep.mubr.bf16.mxu0 0
    %2005 = vmatmul.mubr.bf16.gmra.mrb[0].mxu0 %v1504
    %v2006 = vpop.f32.mrb[0].mxu0
    %v2007 = vadd.f32 %v1765, %v2006
    %v2008 = vpop.f32.mrb[0].mxu0
    %v2009 = vadd.f32 %v1767, %v2008
    %v2010 = vpop.f32.mrb[0].mxu0
    %v2011 = vpop.f32.mrb[0].mxu0
    %2012 = vdwg.mxu0
    %2013 = vmatprep.subr.bf16.mxu0 %v1911
    %2014 = vmatpush1.bf16.msra.mxu0 %v1910
    %2015 = vmatprep.subr.bf16.mxu0 %v1915
    %2016 = vmatpush1.bf16.msra.mxu0 %v1914
    %2017 = vmatprep.subr.bf16.mxu0 %v1919
    %2018 = vmatpush1.bf16.msra.mxu0 %v1918
    %2019 = vmatprep.subr.bf16.mxu0 %v1923
    %2020 = vmatpush1.bf16.msra.mxu0 %v1922
    %2021 = vmatprep.subr.bf16.mxu0 %v1927
    %2022 = vmatpush1.bf16.msra.mxu0 %v1926
    %2023 = vmatprep.subr.bf16.mxu0 %v1931
    %2024 = vmatpush1.bf16.msra.mxu0 %v1930
    %2025 = vmatprep.subr.bf16.mxu0 %v1935
    %2026 = vmatpush1.bf16.msra.mxu0 %v1934
    %2027 = vmatprep.subr.bf16.mxu0 %v1939
    %2028 = vmatpush1.bf16.msra.mxu0 %v1938
    %2029 = vmatprep.subr.bf16.mxu0 0
    %2030 = vmatpush1.bf16.msra.mxu0 0
    %2031 = vmatprep.subr.bf16.mxu0 0
    %2032 = vmatpush1.bf16.msra.mxu0 0
    %2033 = vmatprep.subr.bf16.mxu0 0
    %2034 = vmatpush1.bf16.msra.mxu0 0
    %2035 = vmatprep.subr.bf16.mxu0 0
    %2036 = vmatpush1.bf16.msra.mxu0 0
    %2037 = vmatprep.subr.bf16.mxu0 0
    %2038 = vmatpush1.bf16.msra.mxu0 0
    %2039 = vmatprep.subr.bf16.mxu0 0
    %2040 = vmatpush1.bf16.msra.mxu0 0
    %2041 = vmatprep.subr.bf16.mxu0 0
    %2042 = vmatpush1.bf16.msra.mxu0 0
    %2043 = vmatprep.subr.bf16.mxu0 0
    %2044 = vmatpush1.bf16.msra.mxu0 0
    %2045 = vmatprep.mubr.bf16.mxu0 0
    %2046 = vmatmul.mubr.bf16.gmra.mrb[0].mxu0 %v1504
    %v2047 = vpop.f32.mrb[0].mxu0
    %v2048 = vadd.f32 %v1806, %v2047
    %v2049 = vpop.f32.mrb[0].mxu0
    %v2050 = vadd.f32 %v1808, %v2049
    %v2051 = vpop.f32.mrb[0].mxu0
    %v2052 = vpop.f32.mrb[0].mxu0
    %2053 = vdwg.mxu0
    %v2054 = vld [vmem:[#allocation17] sm:$0xf]
    %v2056 = vlaneseq
    %v2057 = vshrl.u32 %v2056, 7
    %v2058 = vsub.s32 0, %v2057
    %v2059 = vrot.slane %v2054, %v2058
    %v2060 = vlaneseq
    %v2061 = vshrl.u32 %v2060, 7
    %v2062 = vsub.s32 1, %v2061
    %v2063 = vrot.slane %v2054, %v2062
    %v2064 = vlaneseq
    %v2065 = vshrl.u32 %v2064, 7
    %v2066 = vsub.s32 2, %v2065
    %v2067 = vrot.slane %v2054, %v2066
    %v2068 = vlaneseq
    %v2069 = vshrl.u32 %v2068, 7
    %v2070 = vsub.s32 3, %v2069
    %v2071 = vrot.slane %v2054, %v2070
    %v2076 = vadd.f32 %v2007, %v2059
    %v2077 = vadd.f32 %v2009, %v2063
    %v2078 = vadd.f32 %v2048, %v2067
    %v2079 = vadd.f32 %v2050, %v2071
    %v2080 = vxor.u32 %v2076, 2147483648
    %v2081 = vmul.f32 %v2080, 1.442695
    %v2082 = vpow.pop %v2081
    %v2083 = vadd.f32 %v2082, 1.0
    %v2084 = vrcp.pop %v2083
    %v2085 = vmul.f32 1.0, %v2084
    %v2086 = vxor.u32 %v2077, 2147483648
    %v2087 = vmul.f32 %v2086, 1.442695
    %v2088 = vpow.pop %v2087
    %v2089 = vadd.f32 %v2088, 1.0
    %v2090 = vrcp.pop %v2089
    %v2091 = vmul.f32 1.0, %v2090
    %v2092 = vtanh.pop %v2078
    %v2093 = vxor.u32 %v2079, 2147483648
    %v2094 = vmul.f32 %v2093, 1.442695
    %v2095 = vpow.pop %v2094
    %v2096 = vadd.f32 %v2095, 1.0
    %v2097 = vrcp.pop %v2096
    %v2098 = vmul.f32 1.0, %v2097
    %v2099 = vmul.f32 %v2091, %v1503
    %v2100 = vmul.f32 %v2085, %v2092
    %v2101 = vadd.f32 %v2099, %v2100
    %v2102 = vtanh.pop %v2101
    %v2103 = vmul.f32 %v2098, %v2102
    %2104 = vst [vmem:[%s1500] sm:$0xff] %v2103
    %2105 = vst [vmem:[%s1502] sm:$0xff] %v2101
    %v2106 = vpack.c.bf16 %v2103, %v2103
    %v2107 = vld [vmem:[#allocation19] sm:$0xf]
    %v2108 = vld [vmem:[#allocation19 + $0x4] sm:$0xf]
    %v2109 = vld [vmem:[#allocation19 + $0x8] sm:$0xf]
    %v2110 = vld [vmem:[#allocation19 + $0xc] sm:$0xf]
    %v2111 = vld [vmem:[#allocation19 + $0x10] sm:$0xf]
    %v2112 = vld [vmem:[#allocation19 + $0x14] sm:$0xf]
    %v2113 = vld [vmem:[#allocation19 + $0x18] sm:$0xf]
    %v2114 = vld [vmem:[#allocation19 + $0x1c] sm:$0xf]
    %v2115 = vld [vmem:[#allocation19 + $0x20] sm:$0xf]
    %v2116 = vld [vmem:[#allocation19 + $0x24] sm:$0xf]
    %v2117 = vld [vmem:[#allocation19 + $0x28] sm:$0xf]
    %v2118 = vld [vmem:[#allocation19 + $0x2c] sm:$0xf]
    %v2119 = vld [vmem:[#allocation19 + $0x30] sm:$0xf]
    %v2120 = vld [vmem:[#allocation19 + $0x34] sm:$0xf]
    %v2121 = vld [vmem:[#allocation19 + $0x38] sm:$0xf]
    %v2122 = vld [vmem:[#allocation19 + $0x3c] sm:$0xf]
    %v2123 = vld [vmem:[%s12] sm:$0x1]
    %v2125 = vlaneseq
    %v2126 = vshrl.u32 %v2125, 7
    %v2127 = vsub.s32 0, %v2126
    %v2128 = vrot.slane %v2123, %v2127
    %v2146 = vunpack.c.l.b16 %v2107
    %v2147 = vunpack.c.l.b16 %v2108
    %v2148 = vunpack.c.l.b16 %v2109
    %v2149 = vunpack.c.l.b16 %v2110
    %v2150 = vunpack.c.l.b16 %v2111
    %v2151 = vunpack.c.l.b16 %v2112
    %v2152 = vunpack.c.l.b16 %v2113
    %v2153 = vunpack.c.l.b16 %v2114
    %v2154 = vunpack.c.l.b16 %v2115
    %v2155 = vunpack.c.l.b16 %v2116
    %v2156 = vunpack.c.l.b16 %v2117
    %v2157 = vunpack.c.l.b16 %v2118
    %v2158 = vunpack.c.l.b16 %v2119
    %v2159 = vunpack.c.l.b16 %v2120
    %v2160 = vunpack.c.l.b16 %v2121
    %v2161 = vunpack.c.l.b16 %v2122
    %v2162 = vpack.c.b16 %v2147, %v2146
    %v2163 = vpack.c.b16 %v2149, %v2148
    %v2164 = vpack.c.b16 %v2151, %v2150
    %v2165 = vpack.c.b16 %v2153, %v2152
    %v2166 = vpack.c.b16 %v2155, %v2154
    %v2167 = vpack.c.b16 %v2157, %v2156
    %v2168 = vpack.c.b16 %v2159, %v2158
    %v2169 = vpack.c.b16 %v2161, %v2160
    %2178 = vmatprep.subr.bf16.mxu0 0
    %2179 = vmatpush1.bf16.msra.mxu0 %v2162
    %2180 = vmatprep.subr.bf16.mxu0 0
    %2181 = vmatpush1.bf16.msra.mxu0 %v2163
    %2182 = vmatprep.subr.bf16.mxu0 0
    %2183 = vmatpush1.bf16.msra.mxu0 %v2164
    %2184 = vmatprep.subr.bf16.mxu0 0
    %2185 = vmatpush1.bf16.msra.mxu0 %v2165
    %2186 = vmatprep.subr.bf16.mxu0 0
    %2187 = vmatpush1.bf16.msra.mxu0 %v2166
    %2188 = vmatprep.subr.bf16.mxu0 0
    %2189 = vmatpush1.bf16.msra.mxu0 %v2167
    %2190 = vmatprep.subr.bf16.mxu0 0
    %2191 = vmatpush1.bf16.msra.mxu0 %v2168
    %2192 = vmatprep.subr.bf16.mxu0 0
    %2193 = vmatpush1.bf16.msra.mxu0 %v2169
    %2194 = vmatprep.subr.bf16.mxu0 0
    %2195 = vmatpush1.bf16.msra.mxu0 0
    %2196 = vmatprep.subr.bf16.mxu0 0
    %2197 = vmatpush1.bf16.msra.mxu0 0
    %2198 = vmatprep.subr.bf16.mxu0 0
    %2199 = vmatpush1.bf16.msra.mxu0 0
    %2200 = vmatprep.subr.bf16.mxu0 0
    %2201 = vmatpush1.bf16.msra.mxu0 0
    %2202 = vmatprep.subr.bf16.mxu0 0
    %2203 = vmatpush1.bf16.msra.mxu0 0
    %2204 = vmatprep.subr.bf16.mxu0 0
    %2205 = vmatpush1.bf16.msra.mxu0 0
    %2206 = vmatprep.subr.bf16.mxu0 0
    %2207 = vmatpush1.bf16.msra.mxu0 0
    %2208 = vmatprep.subr.bf16.mxu0 0
    %2209 = vmatpush1.bf16.msra.mxu0 0
    %2210 = vmatprep.mubr.bf16.mxu0 0
    %2211 = vmatmul.mubr.bf16.gmra.mrb[0].mxu0 %v2106
    %v2212 = vpop.f32.mrb[0].mxu0
    %v2213 = vadd.f32 %v2128, %v2212
    %v2214 = vpop.f32.mrb[0].mxu0
    %v2215 = vpop.f32.mrb[0].mxu0
    %v2216 = vpop.f32.mrb[0].mxu0
    %2217 = vdwg.mxu0
    %2218 = vst [vmem:[#allocation20] sm:$0xff] %v2213
    // Predicated region
    $region110: #{tpu_custom_call.1} parent=1 // pred_check
      _
    $region111: #{tpu_custom_call.1} parent=1 // pred_check_branch
      %2220 = sbr.rel (0) target = $region113
    $region112: #{tpu_custom_call.1} parent=1 // pred_region
      %s2222 = ssub.s32 128, 128
      %2223 = vsyncadd [#allocation4], %s2222
      %s2225 = sshll.u32 [#allocation20], 4
      %s2226 = int_to_ptr.vmem [resolvable:$true] %s2225
      %2228 = dma.vmem_to_hbm [thread:$0]  %s2226, 128, %s15, [#allocation4]
    $region113: #{tpu_custom_call.1} parent=1 // pred_fallthru
      _
    // Predicated region
    $region114: #{tpu_custom_call.1} parent=1 // pred_check
      _
    $region115: #{tpu_custom_call.1} parent=1 // pred_check_branch
      %2230 = sbr.rel (0) target = $region117
    $region116: #{tpu_custom_call.1} parent=1 // pred_region
      %s2232 = ssub.s32 384, 384
      %2233 = vsyncadd [#allocation22], %s2232
      %s2234 = sshll.u32 [#allocation21], 4
      %s2235 = int_to_ptr.vmem [resolvable:$true] %s2234
      %2240 = dma.vmem_to_hbm [thread:$0]  %s2235, 384, %s16, [#allocation22], 128, 128, 8
    $region117: #{tpu_custom_call.1} parent=1 // pred_fallthru
      _
    // Predicated region
    $region118: #{tpu_custom_call.1} parent=1 // pred_check
      _
    $region119: #{tpu_custom_call.1} parent=1 // pred_check_branch
      %2242 = sbr.rel (0) target = $region121
    $region120: #{tpu_custom_call.1} parent=1 // pred_region
      %s2244 = ssub.s32 384, 384
      %2245 = vsyncadd [#allocation22], %s2244
      %s2246 = sshll.u32 [#allocation23], 4
      %s2247 = int_to_ptr.vmem [resolvable:$true] %s2246
      %2252 = dma.vmem_to_hbm [thread:$0]  %s2247, 384, %s17, [#allocation22], 128, 128, 8
    $region121: #{tpu_custom_call.1} parent=1 // pred_fallthru
      _
    // Predicated region
    $region122: #{tpu_custom_call.1} parent=1 // pred_check
      _
    $region123: #{tpu_custom_call.1} parent=1 // pred_check_branch
      %2254 = sbr.rel (0) target = $region125
    $region124: #{tpu_custom_call.1} parent=1 // pred_region
      %2255 = dma.done [#allocation4], 128
    $region125: #{tpu_custom_call.1} parent=1 // pred_fallthru
      _
    // Predicated region
    $region126: #{tpu_custom_call.1} parent=1 // pred_check
      _
    $region127: #{tpu_custom_call.1} parent=1 // pred_check_branch
      %2257 = sbr.rel (0) target = $region129
    $region128: #{tpu_custom_call.1} parent=1 // pred_region
      %2258 = dma.done [#allocation22], 384
    $region129: #{tpu_custom_call.1} parent=1 // pred_fallthru
      _
    // Predicated region
    $region130: #{tpu_custom_call.1} parent=1 // pred_check
      _
    $region131: #{tpu_custom_call.1} parent=1 // pred_check_branch
      %2260 = sbr.rel (0) target = $region133
    $region132: #{tpu_custom_call.1} parent=1 // pred_region
      %2261 = dma.done [#allocation22], 384
    $region133: #{tpu_custom_call.1} parent=1 // pred_fallthru
      _
    %2262 = vsyncpa [#allocation3], 1
    %2263 = vsyncpa [#allocation6], 1
    %2264 = vsyncpa [#allocation9], 1
    %2265 = vsyncpa [#allocation12], 1
    %2266 = vsyncpa [#allocation15], 1
    %2267 = vsyncpa [#allocation18], 1
    %2268 = vsyncpa [#allocation4], 1
    %2269 = vsyncpa [#allocation22], 1

</llo_original>
